<compile_context>
chip_gen: v6e
topology: v6e:2x2x1
jax: 0.10.0
libtpu: 0.0.40
codegen_flags: <defaults>
</compile_context>

<pallas_src>
import functools

import jax
import jax.numpy as jnp
from jax import lax
from jax.experimental import pallas as pl
from jax.experimental.pallas import tpu as pltpu


# ----------------------------------------------------------------------------
# In-kernel helper: one InvertedResidual block (expand_ratio > 1 path) in the
# folded (H, W*C) lane-dense layout.  BN is already folded into weights/biases.
# ----------------------------------------------------------------------------
def _ir_block(x2d, *, W, ch, w_exp, b_exp, w_dw, b_dw, w_proj, b_proj,
              residual, relu_out):
  WC = W * ch

  # 1x1 expand conv (+BN) + ReLU: lane-dense MXU matmul with block-diagonal weight.
  h = jnp.dot(x2d, w_exp, preferred_element_type=jnp.float32) + b_exp
  h = jnp.maximum(h, 0.0)                                      # (H, W*ch)

  # 3x3 depthwise conv (stride 1, pad 1) (+BN) + ReLU.
  # dx taps: two lane rolls by +/- ch lanes, computed once and reused for all ky rows
  # (wrapped image-edge columns are multiplied by lanes already zeroed in w_dw).
  # dy taps: one zero-row concat per shifted ky partial sum.
  h_l = pltpu.roll(h, shift=ch % WC, axis=1)                   # reads pixel x-1
  h_r = pltpu.roll(h, shift=(-ch) % WC, axis=1)                # reads pixel x+1
  taps = (h_l, h, h_r)

  u = []
  for ky in range(3):
    u_ky = taps[0] * w_dw[3 * ky + 0:3 * ky + 1, :]
    u_ky = u_ky + taps[1] * w_dw[3 * ky + 1:3 * ky + 2, :]
    u_ky = u_ky + taps[2] * w_dw[3 * ky + 2:3 * ky + 3, :]
    u.append(u_ky)                                             # contribution of input row r

  zrow = jnp.zeros((1, WC), jnp.float32)
  acc = (jnp.concatenate([zrow, u[0][:-1, :]], axis=0)         # out[y] += u0[y-1]
         + u[1]                                                # out[y] += u1[y]
         + jnp.concatenate([u[2][1:, :], zrow], axis=0))       # out[y] += u2[y+1]
  g = jnp.maximum(acc + b_dw, 0.0)                             # (H, W*ch)

  # 1x1 project conv (+BN), residual connection, then (optional fused) outer ReLU.
  y = jnp.dot(g, w_proj, preferred_element_type=jnp.float32) + b_proj
  if residual is not None:
    y = y + residual
  if relu_out:
    y = jnp.maximum(y, 0.0)
  return y


# ----------------------------------------------------------------------------
# Fused kernel: both InvertedResidual blocks + the two outer ReLUs, one image
# per grid step (grid over batch).
# ----------------------------------------------------------------------------
def _double_conv_kernel(
    x_ref,
    w1e_ref, b1e_ref, w1d_ref, b1d_ref, w1p_ref, b1p_ref,
    w2e_ref, b2e_ref, w2d_ref, b2d_ref, w2p_ref, b2p_ref,
    o_ref, *, W, hid1, hid2, res1):
  x = x_ref[0]                                                 # (H, W*c_in)

  y1 = _ir_block(x, W=W, ch=hid1,
                 w_exp=w1e_ref[...], b_exp=b1e_ref[...],
                 w_dw=w1d_ref[...], b_dw=b1d_ref[...],
                 w_proj=w1p_ref[...], b_proj=b1p_ref[...],
                 residual=x if res1 else None,
                 relu_out=True)                                # fused outer ReLU #1

  y2 = _ir_block(y1, W=W, ch=hid2,
                 w_exp=w2e_ref[...], b_exp=b2e_ref[...],
                 w_dw=w2d_ref[...], b_dw=b2d_ref[...],
                 w_proj=w2p_ref[...], b_proj=b2p_ref[...],
                 residual=y1,                                  # block2: inp == oup
                 relu_out=True)                                # fused outer ReLU #2
  o_ref[0] = y2                                                # lane-dense store (W*c_out lanes)


# ----------------------------------------------------------------------------
# Wrapper: NCHW in/out, one pallas_call over grid=(N,).
# ----------------------------------------------------------------------------
def double_conv_mobilenet(x_nchw, kp1, kp2):
  """x: NCHW float32 -> NCHW float32 (same semantics as the PyTorch module, eval BN)."""
  N, c_in, H, W = x_nchw.shape
  hid1 = kp1["w_exp"].shape[1] // W
  hid2 = kp2["w_exp"].shape[1] // W
  c_out = kp1["w_proj"].shape[1] // W
  res1 = (c_in == c_out)

  x = jnp.transpose(x_nchw, (0, 2, 3, 1)).reshape(N, H, W * c_in)

  kernel = functools.partial(_double_conv_kernel, W=W, hid1=hid1, hid2=hid2, res1=res1)

  def const_spec(arr):          # full-array block, constant index across the grid
    return pl.BlockSpec(arr.shape, lambda n: (0, 0))

  p_order = ("w_exp", "b_exp", "w_dw", "b_dw", "w_proj", "b_proj")
  params = [kp1[k] for k in p_order] + [kp2[k] for k in p_order]

  in_specs = [pl.BlockSpec((1, H, W * c_in), lambda n: (n, 0, 0))]
  in_specs += [const_spec(p) for p in params]

  out = pl.pallas_call(
      kernel,
      out_shape=jax.ShapeDtypeStruct((N, H, W * c_out), jnp.float32),
      grid_spec=pltpu.PrefetchScalarGridSpec(
          num_scalar_prefetch=0,
          grid=(N,),
          in_specs=in_specs,
          out_specs=pl.BlockSpec((1, H, W * c_out), lambda n: (n, 0, 0))),
      compiler_params=pltpu.CompilerParams(
          dimension_semantics=("parallel",),
          vmem_limit_bytes=64 * 1024 * 1024),
  )(x, *params)

  return jnp.transpose(out.reshape(N, H, W, c_out), (0, 3, 1, 2))


# ----------------------------------------------------------------------------
# Parameters: raw (for the reference) and folded/widened (for the kernel).
# ----------------------------------------------------------------------------
def make_block_params(key, inp, oup, expand_ratio):
  """Raw InvertedResidual (expand_ratio > 1) params; PyTorch-default eval-mode BN."""
  hidden = int(round(inp * expand_ratio))
  k1, k2, k3 = jax.random.split(key, 3)
  eps = 1e-5
  scale_h = jnp.full((hidden,), 1.0 / jnp.sqrt(1.0 + eps), jnp.float32)
  scale_o = jnp.full((oup,), 1.0 / jnp.sqrt(1.0 + eps), jnp.float32)
  return dict(
      w1=jax.random.normal(k1, (inp, hidden), jnp.float32) * 0.2,     # 1x1 expand  (Cin, hid)
      wdw=jax.random.normal(k2, (3, 3, hidden), jnp.float32) * 0.2,   # 3x3 depthwise
      w3=jax.random.normal(k3, (hidden, oup), jnp.float32) * 0.2,     # 1x1 project (hid, Cout)
      s1=scale_h, b1=jnp.zeros((hidden,), jnp.float32),
      s2=scale_h, b2=jnp.zeros((hidden,), jnp.float32),
      s3=scale_o, b3=jnp.zeros((oup,), jnp.float32))


def fold_block_params(p, W):
  """One-time transform: fold eval-mode BN into weights and widen to the (H, W*C) layout."""
  inp, hidden = p["w1"].shape
  oup = p["w3"].shape[1]
  eye = jnp.eye(W, dtype=jnp.float32)

  w_exp = jnp.kron(eye, p["w1"] * p["s1"][None, :])            # (W*Cin, W*hid) block-diagonal
  b_exp = jnp.tile(p["b1"][None, :], (1, W))                   # (1, W*hid)

  wdw = (p["wdw"] * p["s2"][None, None, :]).reshape(9, hidden)
  w_dw = jnp.tile(wdw, (1, W))                                 # (9, W*hid), repeats every hid lanes
  xpos = jnp.arange(W * hidden) // hidden                      # pixel column for each lane
  col_ok = jnp.stack([(xpos >= 1).astype(jnp.float32),         # dx = -1 taps valid only for x>=1
                      jnp.ones((W * hidden,), jnp.float32),    # dx =  0
                      (xpos <= W - 2).astype(jnp.float32)],    # dx = +1 taps valid only for x<=W-2
                     axis=0)
  w_dw = w_dw * jnp.tile(col_ok, (3, 1))                       # zero image-edge lanes (no in-kernel masks)
  b_dw = jnp.tile(p["b2"][None, :], (1, W))                    # (1, W*hid)

  w_proj = jnp.kron(eye, p["w3"] * p["s3"][None, :])           # (W*hid, W*Cout) block-diagonal
  b_proj = jnp.tile(p["b3"][None, :], (1, W))                  # (1, W*Cout)
  return dict(w_exp=w_exp, b_exp=b_exp, w_dw=w_dw, b_dw=b_dw,
              w_proj=w_proj, b_proj=b_proj)


# ----------------------------------------------------------------------------
# Pure-JAX reference (lax.conv, unfolded params) for correctness check.
# ----------------------------------------------------------------------------
def _ir_ref(x_nhwc, p, use_res):
  dn = ("NHWC", "HWIO", "NHWC")
  inp, hidden = p["w1"].shape
  oup = p["w3"].shape[1]
  h = lax.conv_general_dilated(x_nhwc, p["w1"].reshape(1, 1, inp, hidden),
                               (1, 1), "VALID", dimension_numbers=dn)
  h = jnp.maximum(h * p["s1"] + p["b1"], 0.0)
  g = lax.conv_general_dilated(h, p["wdw"].reshape(3, 3, 1, hidden),
                               (1, 1), ((1, 1), (1, 1)),
                               dimension_numbers=dn, feature_group_count=hidden)
  g = jnp.maximum(g * p["s2"] + p["b2"], 0.0)
  y = lax.conv_general_dilated(g, p["w3"].reshape(1, 1, hidden, oup),
                               (1, 1), "VALID", dimension_numbers=dn)
  y = y * p["s3"] + p["b3"]
  if use_res:
    y = y + x_nhwc
  return jnp.maximum(y, 0.0)


def _double_conv_ref(x_nchw, p1, p2):
  x = jnp.transpose(x_nchw, (0, 2, 3, 1))
  c_in = x.shape[-1]
  c_out = p1["w3"].shape[1]
  y = _ir_ref(x, p1, use_res=(c_in == c_out))
  y = _ir_ref(y, p2, use_res=True)
  return jnp.transpose(y, (0, 3, 1, 2))


if __name__ == "__main__":
  key = jax.random.PRNGKey(0)
  kx, k1, k2 = jax.random.split(key, 3)

  in_ch, out_ch, expand_ratio = 4, 8, 4
  N, H, W = 2, 16, 16

  x = jax.random.normal(kx, (N, in_ch, H, W), jnp.float32)
  raw1 = make_block_params(k1, in_ch, out_ch, expand_ratio)
  raw2 = make_block_params(k2, out_ch, out_ch, expand_ratio)

  # One-time BN fold + widening to the lane-dense folded layout (not per call).
  kp1 = fold_block_params(raw1, W)
  kp2 = fold_block_params(raw2, W)

  run = jax.jit(double_conv_mobilenet)
  out = jax.block_until_ready(run(x, kp1, kp2))
  assert out.shape == (N, out_ch, H, W), out.shape

  ref = _double_conv_ref(x, raw1, raw2)
  err = float(jnp.max(jnp.abs(out - ref)))
  assert jnp.allclose(out, ref, atol=1e-4, rtol=1e-4), err

  print("KERNEL_OK")
</pallas_src>

<mosaic_0001>
module attributes {stable_mosaic.version = 11 : i64} {
  func.func @_double_conv_kernel(%arg0: i32, %arg1: memref<1x16x64xf32, #tpu.memory_space<vmem>>, %arg2: memref<64x256xf32, #tpu.memory_space<vmem>>, %arg3: memref<1x256xf32, #tpu.memory_space<vmem>>, %arg4: memref<9x256xf32, #tpu.memory_space<vmem>>, %arg5: memref<1x256xf32, #tpu.memory_space<vmem>>, %arg6: memref<256x128xf32, #tpu.memory_space<vmem>>, %arg7: memref<1x128xf32, #tpu.memory_space<vmem>>, %arg8: memref<128x512xf32, #tpu.memory_space<vmem>>, %arg9: memref<1x512xf32, #tpu.memory_space<vmem>>, %arg10: memref<9x512xf32, #tpu.memory_space<vmem>>, %arg11: memref<1x512xf32, #tpu.memory_space<vmem>>, %arg12: memref<512x128xf32, #tpu.memory_space<vmem>>, %arg13: memref<1x128xf32, #tpu.memory_space<vmem>>, %arg14: memref<1x16x128xf32, #tpu.memory_space<vmem>>) attributes {dimension_semantics = [#tpu.dimension_semantics<parallel>], iteration_bounds = array<i64: 2>, scalar_prefetch = 0 : i64, scratch_operands = 0 : i64, tpu.core_type = #tpu.core_type<tc>, window_params = [{transform_indices = @transform_0, window_bounds = array<i64: 1, 16, 64>}, {pipeline_mode = #tpu.pipeline_mode<synchronous>, transform_indices = @transform_1, window_bounds = array<i64: 64, 256>}, {pipeline_mode = #tpu.pipeline_mode<synchronous>, transform_indices = @transform_2, window_bounds = array<i64: 1, 256>}, {pipeline_mode = #tpu.pipeline_mode<synchronous>, transform_indices = @transform_3, window_bounds = array<i64: 9, 256>}, {pipeline_mode = #tpu.pipeline_mode<synchronous>, transform_indices = @transform_4, window_bounds = array<i64: 1, 256>}, {pipeline_mode = #tpu.pipeline_mode<synchronous>, transform_indices = @transform_5, window_bounds = array<i64: 256, 128>}, {pipeline_mode = #tpu.pipeline_mode<synchronous>, transform_indices = @transform_6, window_bounds = array<i64: 1, 128>}, {pipeline_mode = #tpu.pipeline_mode<synchronous>, transform_indices = @transform_7, window_bounds = array<i64: 128, 512>}, {pipeline_mode = #tpu.pipeline_mode<synchronous>, transform_indices = @transform_8, window_bounds = array<i64: 1, 512>}, {pipeline_mode = #tpu.pipeline_mode<synchronous>, transform_indices = @transform_9, window_bounds = array<i64: 9, 512>}, {pipeline_mode = #tpu.pipeline_mode<synchronous>, transform_indices = @transform_10, window_bounds = array<i64: 1, 512>}, {pipeline_mode = #tpu.pipeline_mode<synchronous>, transform_indices = @transform_11, window_bounds = array<i64: 512, 128>}, {pipeline_mode = #tpu.pipeline_mode<synchronous>, transform_indices = @transform_12, window_bounds = array<i64: 1, 128>}, {transform_indices = @transform_13, window_bounds = array<i64: 1, 16, 128>}]} {
    %c0 = arith.constant 0 : index
    %c0_0 = arith.constant 0 : index
    %c0_1 = arith.constant 0 : index
    %0 = vector.load %arg1[%c0, %c0_0, %c0_1] : memref<1x16x64xf32, #tpu.memory_space<vmem>>, vector<1x16x64xf32>
    %1 = vector.shape_cast %0 : vector<1x16x64xf32> to vector<16x64xf32>
    %c0_2 = arith.constant 0 : index
    %c0_3 = arith.constant 0 : index
    %2 = vector.load %arg2[%c0_2, %c0_3] : memref<64x256xf32, #tpu.memory_space<vmem>>, vector<64x256xf32>
    %c0_4 = arith.constant 0 : index
    %c0_5 = arith.constant 0 : index
    %3 = vector.load %arg3[%c0_4, %c0_5] : memref<1x256xf32, #tpu.memory_space<vmem>>, vector<1x256xf32>
    %c0_6 = arith.constant 0 : index
    %c0_7 = arith.constant 0 : index
    %4 = vector.load %arg4[%c0_6, %c0_7] : memref<9x256xf32, #tpu.memory_space<vmem>>, vector<9x256xf32>
    %c0_8 = arith.constant 0 : index
    %c0_9 = arith.constant 0 : index
    %5 = vector.load %arg5[%c0_8, %c0_9] : memref<1x256xf32, #tpu.memory_space<vmem>>, vector<1x256xf32>
    %c0_10 = arith.constant 0 : index
    %c0_11 = arith.constant 0 : index
    %6 = vector.load %arg6[%c0_10, %c0_11] : memref<256x128xf32, #tpu.memory_space<vmem>>, vector<256x128xf32>
    %c0_12 = arith.constant 0 : index
    %c0_13 = arith.constant 0 : index
    %7 = vector.load %arg7[%c0_12, %c0_13] : memref<1x128xf32, #tpu.memory_space<vmem>>, vector<1x128xf32>
    %cst = arith.constant dense<0.000000e+00> : vector<16x256xf32>
    %8 = tpu.matmul %1, %2, %cst {dimension_numbers = #tpu.dot_dimension_numbers<[1], [0], [0], [1], [0, 0, 1, 1], [], []>} : vector<16x64xf32>, vector<64x256xf32>, vector<16x256xf32> -> vector<16x256xf32>
    %9 = vector.broadcast %3 : vector<1x256xf32> to vector<16x256xf32>
    %10 = arith.addf %8, %9 : vector<16x256xf32>
    %cst_14 = arith.constant 0.000000e+00 : f32
    %11 = vector.broadcast %cst_14 : f32 to vector<16x256xf32>
    %12 = arith.maximumf %10, %11 : vector<16x256xf32>
    %c16_i32 = arith.constant 16 : i32
    %13 = tpu.dynamic_rotate %12 by %c16_i32 dim 1 : vector<16x256xf32>, i32 -> vector<16x256xf32>
    %c240_i32 = arith.constant 240 : i32
    %14 = tpu.dynamic_rotate %12 by %c240_i32 dim 1 : vector<16x256xf32>, i32 -> vector<16x256xf32>
    %15 = vector.extract_strided_slice %4 {offsets = [0, 0], sizes = [1, 256], strides = [1, 1]} : vector<9x256xf32> to vector<1x256xf32>
    %16 = vector.broadcast %15 : vector<1x256xf32> to vector<16x256xf32>
    %17 = arith.mulf %13, %16 : vector<16x256xf32>
    %18 = vector.extract_strided_slice %4 {offsets = [1, 0], sizes = [1, 256], strides = [1, 1]} : vector<9x256xf32> to vector<1x256xf32>
    %19 = vector.broadcast %18 : vector<1x256xf32> to vector<16x256xf32>
    %20 = arith.mulf %12, %19 : vector<16x256xf32>
    %21 = arith.addf %17, %20 : vector<16x256xf32>
    %22 = vector.extract_strided_slice %4 {offsets = [2, 0], sizes = [1, 256], strides = [1, 1]} : vector<9x256xf32> to vector<1x256xf32>
    %23 = vector.broadcast %22 : vector<1x256xf32> to vector<16x256xf32>
    %24 = arith.mulf %14, %23 : vector<16x256xf32>
    %25 = arith.addf %21, %24 : vector<16x256xf32>
    %26 = vector.extract_strided_slice %4 {offsets = [3, 0], sizes = [1, 256], strides = [1, 1]} : vector<9x256xf32> to vector<1x256xf32>
    %27 = vector.broadcast %26 : vector<1x256xf32> to vector<16x256xf32>
    %28 = arith.mulf %13, %27 : vector<16x256xf32>
    %29 = vector.extract_strided_slice %4 {offsets = [4, 0], sizes = [1, 256], strides = [1, 1]} : vector<9x256xf32> to vector<1x256xf32>
    %30 = vector.broadcast %29 : vector<1x256xf32> to vector<16x256xf32>
    %31 = arith.mulf %12, %30 : vector<16x256xf32>
    %32 = arith.addf %28, %31 : vector<16x256xf32>
    %33 = vector.extract_strided_slice %4 {offsets = [5, 0], sizes = [1, 256], strides = [1, 1]} : vector<9x256xf32> to vector<1x256xf32>
    %34 = vector.broadcast %33 : vector<1x256xf32> to vector<16x256xf32>
    %35 = arith.mulf %14, %34 : vector<16x256xf32>
    %36 = arith.addf %32, %35 : vector<16x256xf32>
    %37 = vector.extract_strided_slice %4 {offsets = [6, 0], sizes = [1, 256], strides = [1, 1]} : vector<9x256xf32> to vector<1x256xf32>
    %38 = vector.broadcast %37 : vector<1x256xf32> to vector<16x256xf32>
    %39 = arith.mulf %13, %38 : vector<16x256xf32>
    %40 = vector.extract_strided_slice %4 {offsets = [7, 0], sizes = [1, 256], strides = [1, 1]} : vector<9x256xf32> to vector<1x256xf32>
    %41 = vector.broadcast %40 : vector<1x256xf32> to vector<16x256xf32>
    %42 = arith.mulf %12, %41 : vector<16x256xf32>
    %43 = arith.addf %39, %42 : vector<16x256xf32>
    %44 = vector.extract_strided_slice %4 {offsets = [8, 0], sizes = [1, 256], strides = [1, 1]} : vector<9x256xf32> to vector<1x256xf32>
    %45 = vector.broadcast %44 : vector<1x256xf32> to vector<16x256xf32>
    %46 = arith.mulf %14, %45 : vector<16x256xf32>
    %47 = arith.addf %43, %46 : vector<16x256xf32>
    %cst_15 = arith.constant 0.000000e+00 : f32
    %48 = vector.broadcast %cst_15 : f32 to vector<1x256xf32>
    %49 = vector.extract_strided_slice %25 {offsets = [0, 0], sizes = [15, 256], strides = [1, 1]} : vector<16x256xf32> to vector<15x256xf32>
    %50 = tpu.concatenate %48, %49 in 0 : vector<1x256xf32>, vector<15x256xf32> -> vector<16x256xf32>
    %51 = arith.addf %50, %36 : vector<16x256xf32>
    %52 = vector.extract_strided_slice %47 {offsets = [1, 0], sizes = [15, 256], strides = [1, 1]} : vector<16x256xf32> to vector<15x256xf32>
    %53 = tpu.concatenate %52, %48 in 0 : vector<15x256xf32>, vector<1x256xf32> -> vector<16x256xf32>
    %54 = arith.addf %51, %53 : vector<16x256xf32>
    %55 = vector.broadcast %5 : vector<1x256xf32> to vector<16x256xf32>
    %56 = arith.addf %54, %55 : vector<16x256xf32>
    %cst_16 = arith.constant 0.000000e+00 : f32
    %57 = vector.broadcast %cst_16 : f32 to vector<16x256xf32>
    %58 = arith.maximumf %56, %57 : vector<16x256xf32>
    %cst_17 = arith.constant dense<0.000000e+00> : vector<16x128xf32>
    %59 = tpu.matmul %58, %6, %cst_17 {dimension_numbers = #tpu.dot_dimension_numbers<[1], [0], [0], [1], [0, 0, 1, 1], [], []>} : vector<16x256xf32>, vector<256x128xf32>, vector<16x128xf32> -> vector<16x128xf32>
    %60 = vector.broadcast %7 : vector<1x128xf32> to vector<16x128xf32>
    %61 = arith.addf %59, %60 : vector<16x128xf32>
    %cst_18 = arith.constant 0.000000e+00 : f32
    %62 = vector.broadcast %cst_18 : f32 to vector<16x128xf32>
    %63 = arith.maximumf %61, %62 : vector<16x128xf32>
    %c0_19 = arith.constant 0 : index
    %c0_20 = arith.constant 0 : index
    %64 = vector.load %arg8[%c0_19, %c0_20] : memref<128x512xf32, #tpu.memory_space<vmem>>, vector<128x512xf32>
    %c0_21 = arith.constant 0 : index
    %c0_22 = arith.constant 0 : index
    %65 = vector.load %arg9[%c0_21, %c0_22] : memref<1x512xf32, #tpu.memory_space<vmem>>, vector<1x512xf32>
    %c0_23 = arith.constant 0 : index
    %c0_24 = arith.constant 0 : index
    %66 = vector.load %arg10[%c0_23, %c0_24] : memref<9x512xf32, #tpu.memory_space<vmem>>, vector<9x512xf32>
    %c0_25 = arith.constant 0 : index
    %c0_26 = arith.constant 0 : index
    %67 = vector.load %arg11[%c0_25, %c0_26] : memref<1x512xf32, #tpu.memory_space<vmem>>, vector<1x512xf32>
    %c0_27 = arith.constant 0 : index
    %c0_28 = arith.constant 0 : index
    %68 = vector.load %arg12[%c0_27, %c0_28] : memref<512x128xf32, #tpu.memory_space<vmem>>, vector<512x128xf32>
    %c0_29 = arith.constant 0 : index
    %c0_30 = arith.constant 0 : index
    %69 = vector.load %arg13[%c0_29, %c0_30] : memref<1x128xf32, #tpu.memory_space<vmem>>, vector<1x128xf32>
    %cst_31 = arith.constant dense<0.000000e+00> : vector<16x512xf32>
    %70 = tpu.matmul %63, %64, %cst_31 {dimension_numbers = #tpu.dot_dimension_numbers<[1], [0], [0], [1], [0, 0, 1, 1], [], []>} : vector<16x128xf32>, vector<128x512xf32>, vector<16x512xf32> -> vector<16x512xf32>
    %71 = vector.broadcast %65 : vector<1x512xf32> to vector<16x512xf32>
    %72 = arith.addf %70, %71 : vector<16x512xf32>
    %cst_32 = arith.constant 0.000000e+00 : f32
    %73 = vector.broadcast %cst_32 : f32 to vector<16x512xf32>
    %74 = arith.maximumf %72, %73 : vector<16x512xf32>
    %c32_i32 = arith.constant 32 : i32
    %75 = tpu.dynamic_rotate %74 by %c32_i32 dim 1 : vector<16x512xf32>, i32 -> vector<16x512xf32>
    %c480_i32 = arith.constant 480 : i32
    %76 = tpu.dynamic_rotate %74 by %c480_i32 dim 1 : vector<16x512xf32>, i32 -> vector<16x512xf32>
    %77 = vector.extract_strided_slice %66 {offsets = [0, 0], sizes = [1, 512], strides = [1, 1]} : vector<9x512xf32> to vector<1x512xf32>
    %78 = vector.broadcast %77 : vector<1x512xf32> to vector<16x512xf32>
    %79 = arith.mulf %75, %78 : vector<16x512xf32>
    %80 = vector.extract_strided_slice %66 {offsets = [1, 0], sizes = [1, 512], strides = [1, 1]} : vector<9x512xf32> to vector<1x512xf32>
    %81 = vector.broadcast %80 : vector<1x512xf32> to vector<16x512xf32>
    %82 = arith.mulf %74, %81 : vector<16x512xf32>
    %83 = arith.addf %79, %82 : vector<16x512xf32>
    %84 = vector.extract_strided_slice %66 {offsets = [2, 0], sizes = [1, 512], strides = [1, 1]} : vector<9x512xf32> to vector<1x512xf32>
    %85 = vector.broadcast %84 : vector<1x512xf32> to vector<16x512xf32>
    %86 = arith.mulf %76, %85 : vector<16x512xf32>
    %87 = arith.addf %83, %86 : vector<16x512xf32>
    %88 = vector.extract_strided_slice %66 {offsets = [3, 0], sizes = [1, 512], strides = [1, 1]} : vector<9x512xf32> to vector<1x512xf32>
    %89 = vector.broadcast %88 : vector<1x512xf32> to vector<16x512xf32>
    %90 = arith.mulf %75, %89 : vector<16x512xf32>
    %91 = vector.extract_strided_slice %66 {offsets = [4, 0], sizes = [1, 512], strides = [1, 1]} : vector<9x512xf32> to vector<1x512xf32>
    %92 = vector.broadcast %91 : vector<1x512xf32> to vector<16x512xf32>
    %93 = arith.mulf %74, %92 : vector<16x512xf32>
    %94 = arith.addf %90, %93 : vector<16x512xf32>
    %95 = vector.extract_strided_slice %66 {offsets = [5, 0], sizes = [1, 512], strides = [1, 1]} : vector<9x512xf32> to vector<1x512xf32>
    %96 = vector.broadcast %95 : vector<1x512xf32> to vector<16x512xf32>
    %97 = arith.mulf %76, %96 : vector<16x512xf32>
    %98 = arith.addf %94, %97 : vector<16x512xf32>
    %99 = vector.extract_strided_slice %66 {offsets = [6, 0], sizes = [1, 512], strides = [1, 1]} : vector<9x512xf32> to vector<1x512xf32>
    %100 = vector.broadcast %99 : vector<1x512xf32> to vector<16x512xf32>
    %101 = arith.mulf %75, %100 : vector<16x512xf32>
    %102 = vector.extract_strided_slice %66 {offsets = [7, 0], sizes = [1, 512], strides = [1, 1]} : vector<9x512xf32> to vector<1x512xf32>
    %103 = vector.broadcast %102 : vector<1x512xf32> to vector<16x512xf32>
    %104 = arith.mulf %74, %103 : vector<16x512xf32>
    %105 = arith.addf %101, %104 : vector<16x512xf32>
    %106 = vector.extract_strided_slice %66 {offsets = [8, 0], sizes = [1, 512], strides = [1, 1]} : vector<9x512xf32> to vector<1x512xf32>
    %107 = vector.broadcast %106 : vector<1x512xf32> to vector<16x512xf32>
    %108 = arith.mulf %76, %107 : vector<16x512xf32>
    %109 = arith.addf %105, %108 : vector<16x512xf32>
    %cst_33 = arith.constant 0.000000e+00 : f32
    %110 = vector.broadcast %cst_33 : f32 to vector<1x512xf32>
    %111 = vector.extract_strided_slice %87 {offsets = [0, 0], sizes = [15, 512], strides = [1, 1]} : vector<16x512xf32> to vector<15x512xf32>
    %112 = tpu.concatenate %110, %111 in 0 : vector<1x512xf32>, vector<15x512xf32> -> vector<16x512xf32>
    %113 = arith.addf %112, %98 : vector<16x512xf32>
    %114 = vector.extract_strided_slice %109 {offsets = [1, 0], sizes = [15, 512], strides = [1, 1]} : vector<16x512xf32> to vector<15x512xf32>
    %115 = tpu.concatenate %114, %110 in 0 : vector<15x512xf32>, vector<1x512xf32> -> vector<16x512xf32>
    %116 = arith.addf %113, %115 : vector<16x512xf32>
    %117 = vector.broadcast %67 : vector<1x512xf32> to vector<16x512xf32>
    %118 = arith.addf %116, %117 : vector<16x512xf32>
    %cst_34 = arith.constant 0.000000e+00 : f32
    %119 = vector.broadcast %cst_34 : f32 to vector<16x512xf32>
    %120 = arith.maximumf %118, %119 : vector<16x512xf32>
    %cst_35 = arith.constant dense<0.000000e+00> : vector<16x128xf32>
    %121 = tpu.matmul %120, %68, %cst_35 {dimension_numbers = #tpu.dot_dimension_numbers<[1], [0], [0], [1], [0, 0, 1, 1], [], []>} : vector<16x512xf32>, vector<512x128xf32>, vector<16x128xf32> -> vector<16x128xf32>
    %122 = vector.broadcast %69 : vector<1x128xf32> to vector<16x128xf32>
    %123 = arith.addf %121, %122 : vector<16x128xf32>
    %124 = arith.addf %123, %63 : vector<16x128xf32>
    %cst_36 = arith.constant 0.000000e+00 : f32
    %125 = vector.broadcast %cst_36 : f32 to vector<16x128xf32>
    %126 = arith.maximumf %124, %125 : vector<16x128xf32>
    %c0_37 = arith.constant 0 : index
    %c0_38 = arith.constant 0 : index
    %c0_39 = arith.constant 0 : index
    %127 = vector.load %arg14[%c0_37, %c0_38, %c0_39] : memref<1x16x128xf32, #tpu.memory_space<vmem>>, vector<1x16x128xf32>
    %128 = vector.shape_cast %127 : vector<1x16x128xf32> to vector<16x128xf32>
    %129 = vector.shape_cast %126 : vector<16x128xf32> to vector<1x16x128xf32>
    tpu.vector_store %arg14[%c0_37, %c0_38, %c0_39], %129 {strides = array<i32>} : memref<1x16x128xf32, #tpu.memory_space<vmem>>, vector<1x16x128xf32>,
    return
  }
  func.func @transform_0(%arg0: i32) -> (i32, i32, i32) {
    %c0_i32 = arith.constant 0 : i32
    %c0_i32_0 = arith.constant 0 : i32
    %c0_i32_1 = arith.constant 0 : i32
    return %arg0, %c0_i32, %c0_i32_0 : i32, i32, i32
  }
  func.func @transform_1(%arg0: i32) -> (i32, i32) {
    %c0_i32 = arith.constant 0 : i32
    %c0_i32_0 = arith.constant 0 : i32
    %c0_i32_1 = arith.constant 0 : i32
    return %c0_i32, %c0_i32_0 : i32, i32
  }
  func.func @transform_2(%arg0: i32) -> (i32, i32) {
    %c0_i32 = arith.constant 0 : i32
    %c0_i32_0 = arith.constant 0 : i32
    %c0_i32_1 = arith.constant 0 : i32
    return %c0_i32, %c0_i32_0 : i32, i32
  }
  func.func @transform_3(%arg0: i32) -> (i32, i32) {
    %c0_i32 = arith.constant 0 : i32
    %c0_i32_0 = arith.constant 0 : i32
    %c0_i32_1 = arith.constant 0 : i32
    return %c0_i32, %c0_i32_0 : i32, i32
  }
  func.func @transform_4(%arg0: i32) -> (i32, i32) {
    %c0_i32 = arith.constant 0 : i32
    %c0_i32_0 = arith.constant 0 : i32
    %c0_i32_1 = arith.constant 0 : i32
    return %c0_i32, %c0_i32_0 : i32, i32
  }
  func.func @transform_5(%arg0: i32) -> (i32, i32) {
    %c0_i32 = arith.constant 0 : i32
    %c0_i32_0 = arith.constant 0 : i32
    %c0_i32_1 = arith.constant 0 : i32
    return %c0_i32, %c0_i32_0 : i32, i32
  }
  func.func @transform_6(%arg0: i32) -> (i32, i32) {
    %c0_i32 = arith.constant 0 : i32
    %c0_i32_0 = arith.constant 0 : i32
    %c0_i32_1 = arith.constant 0 : i32
    return %c0_i32, %c0_i32_0 : i32, i32
  }
  func.func @transform_7(%arg0: i32) -> (i32, i32) {
    %c0_i32 = arith.constant 0 : i32
    %c0_i32_0 = arith.constant 0 : i32
    %c0_i32_1 = arith.constant 0 : i32
    return %c0_i32, %c0_i32_0 : i32, i32
  }
  func.func @transform_8(%arg0: i32) -> (i32, i32) {
    %c0_i32 = arith.constant 0 : i32
    %c0_i32_0 = arith.constant 0 : i32
    %c0_i32_1 = arith.constant 0 : i32
    return %c0_i32, %c0_i32_0 : i32, i32
  }
  func.func @transform_9(%arg0: i32) -> (i32, i32) {
    %c0_i32 = arith.constant 0 : i32
    %c0_i32_0 = arith.constant 0 : i32
    %c0_i32_1 = arith.constant 0 : i32
    return %c0_i32, %c0_i32_0 : i32, i32
  }
  func.func @transform_10(%arg0: i32) -> (i32, i32) {
    %c0_i32 = arith.constant 0 : i32
    %c0_i32_0 = arith.constant 0 : i32
    %c0_i32_1 = arith.constant 0 : i32
    return %c0_i32, %c0_i32_0 : i32, i32
  }
  func.func @transform_11(%arg0: i32) -> (i32, i32) {
    %c0_i32 = arith.constant 0 : i32
    %c0_i32_0 = arith.constant 0 : i32
    %c0_i32_1 = arith.constant 0 : i32
    return %c0_i32, %c0_i32_0 : i32, i32
  }
  func.func @transform_12(%arg0: i32) -> (i32, i32) {
    %c0_i32 = arith.constant 0 : i32
    %c0_i32_0 = arith.constant 0 : i32
    %c0_i32_1 = arith.constant 0 : i32
    return %c0_i32, %c0_i32_0 : i32, i32
  }
  func.func @transform_13(%arg0: i32) -> (i32, i32, i32) {
    %c0_i32 = arith.constant 0 : i32
    %c0_i32_0 = arith.constant 0 : i32
    %c0_i32_1 = arith.constant 0 : i32
    return %arg0, %c0_i32, %c0_i32_0 : i32, i32, i32
  }
}

</mosaic_0001>

<llo_original>
// kernel: double_conv_mobilenet.1
$region0: #{double_conv_mobilenet.1}
  #allocation0 [shape = 'u32[]', space=smem, size = 0x4, offset = 0x4, fixed_abs, tag = 'smem constant byte address 0x4 - core index']
  #allocation1 [shape = 'u32[144,128]{1,0:T(1,128)}', space=vmem, size = 0x12000, scoped, tag = 'internal scratch']
  %s0 = inlined_call_operand.vmem [shape: f32[2,16,64], index: 0, kind: input, shape index: {}]
  %s1 = inlined_call_operand.vmem [shape: f32[64,256], index: 1, kind: input, shape index: {}]
  %s2 = inlined_call_operand.vmem [shape: f32[1,256], index: 2, kind: input, shape index: {}]
  %s3 = inlined_call_operand.vmem [shape: f32[9,256], index: 3, kind: input, shape index: {}]
  %s4 = inlined_call_operand.vmem [shape: f32[1,256], index: 4, kind: input, shape index: {}]
  %s5 = inlined_call_operand.vmem [shape: f32[256,128], index: 5, kind: input, shape index: {}]
  %s6 = inlined_call_operand.vmem [shape: f32[1,128], index: 6, kind: input, shape index: {}]
  %s7 = inlined_call_operand.hbm [shape: f32[128,512], index: 7, kind: input, shape index: {}]
  %s8 = inlined_call_operand.vmem [shape: f32[1,512], index: 8, kind: input, shape index: {}]
  %s9 = inlined_call_operand.hbm [shape: f32[9,512], index: 9, kind: input, shape index: {}]
  %s10 = inlined_call_operand.vmem [shape: f32[1,512], index: 10, kind: input, shape index: {}]
  %s11 = inlined_call_operand.hbm [shape: f32[512,128], index: 11, kind: input, shape index: {}]
  %s12 = inlined_call_operand.vmem [shape: f32[1,128], index: 12, kind: input, shape index: {}]
  %s13 = inlined_call_operand.vmem [shape: f32[2,16,128], index: 13, kind: output, shape index: {}]
  %s14 = sld [smem:[#allocation0]]
  $region97: #{double_conv_mobilenet.1} parent=0
    _
  %s16 = ssub.s32 1, %s14
  %s17 = scalar_select 0, %s16, %s14
  $region1: #{double_conv_mobilenet.1} parent=0
    #allocation2 [shape = 'u8[262144]{0}', space=vmem, size = 0x40000, scoped, tag = 'input window, operand 7, single buffered']
    #allocation3 [shape = 's32[2]{0}', space=sflag, size = 0x8, scoped, tag = 'scoped memory for double_conv_mobilenet.1']
    #allocation4 [shape = 'u8[32768]{0}', space=vmem, size = 0x8000, scoped, tag = 'input window, operand 9, single buffered']
    #allocation5 [shape = 's32[1]{0}', space=sflag, size = 0x4, scoped, tag = 'scoped memory for double_conv_mobilenet.1']
    #allocation6 [shape = 'u8[262144]{0}', space=vmem, size = 0x40000, scoped, tag = 'input window, operand 11, single buffered']
    %18 = vsyncpa [#allocation3], 0
    %19 = vsyncpa [#allocation5], 0
    loop: start=0, step=1, limit=4
    $region2: #{double_conv_mobilenet.1} parent=1 // loop_pre_header
      _
    $region3: #{double_conv_mobilenet.1} parent=1 // loop_header
      %s21 = sphi 0, %s25
      %p22 = scmp.ge.s32.totalorder %s21, 4
      %s31 = sphi 0, %s33
      %s34 = sphi 0, %s31
      %s35 = sphi 0, %s34
      %s51 = sphi 0, %s35
      %s55 = sphi 0, %s55
      %s57 = sphi 0, %s55
      %s58 = sphi 0, %s57
      %s72 = sphi 0, %s58
      %s76 = sphi 0, %s76
      %s78 = sphi 0, %s76
      %s79 = sphi 0, %s78
      %s93 = sphi 0, %s79
      %s97 = sphi 0, %s97
      %s99 = sphi 0, %s97
      %s100 = sphi 0, %s99
      %s114 = sphi 0, %s100
      %s118 = sphi 0, %s118
      %s120 = sphi 0, %s118
      %s121 = sphi 0, %s120
      %s135 = sphi 0, %s121
      %s139 = sphi 0, %s139
      %s141 = sphi 0, %s139
      %s142 = sphi 0, %s141
      %s156 = sphi 0, %s142
      %s160 = sphi 0, %s160
      %s162 = sphi 0, %s160
      %s163 = sphi 0, %s162
      %s177 = sphi 0, %s163
      %s181 = sphi 0, %s181
      %s183 = sphi 0, %s181
      %s184 = sphi 0, %s183
      %s198 = sphi 0, %s184
      %s202 = sphi 0, %s202
      %s204 = sphi 0, %s202
      %s205 = sphi 0, %s204
      %s219 = sphi 0, %s205
      %s223 = sphi 0, %s223
      %s225 = sphi 0, %s223
      %s226 = sphi 0, %s225
      %s240 = sphi 0, %s226
      %s244 = sphi 0, %s244
      %s246 = sphi 0, %s244
      %s247 = sphi 0, %s246
      %s261 = sphi 0, %s247
      %s265 = sphi 0, %s265
      %s267 = sphi 0, %s265
      %s268 = sphi 0, %s267
      %s282 = sphi 0, %s268
      %s286 = sphi 0, %s286
      %s288 = sphi 0, %s286
      %s289 = sphi 0, %s288
      %s303 = sphi 0, %s289
      %s309 = sphi 0, %s311
      %s312 = sphi 0, %s309
      %s313 = sphi 0, %s312
      %s329 = sphi 0, %s313
    $region4: #{double_conv_mobilenet.1} parent=1 // loop_header_branch
      %24 = sbr.rel (%p22) target = $region8
    $region5: #{double_conv_mobilenet.1} parent=1 // loop_body
      %s26 = ssub.s32 %s21, 1
      %s27 = ssub.s32 %s21, 2
      %s28 = sadd.s32 %s21, 1
      %s29 = ssub.s32 %s21, %s28
      %p30 = scmp.eq.s32.totalorder %s29, 0
      %s32 = sadd.s32 %s31, 1
      %s33 = scalar_select %p30, %s31, %s32
      %p36 = pneg %p30
      %p37 = scmp.eq.s32.totalorder %s21, 1
      %p38 = por %p36, %p37
      %p39 = scmp.ne.s32.totalorder %s31, %s34
      %p40 = scmp.eq.s32.totalorder %s21, 0
      %p41 = por %p39, %p40
      %p42 = scmp.ne.s32.totalorder %s31, %s34
      %p43 = scmp.eq.s32.totalorder %s26, 1
      %p44 = por %p42, %p43
      %p45 = scmp.ne.s32.totalorder %s34, %s35
      %p46 = scmp.eq.s32.totalorder %s26, 0
      %p47 = por %p45, %p46
      %p48 = scmp.ne.s32.totalorder %s34, %s35
      %p49 = scmp.eq.s32.totalorder %s27, 1
      %p50 = por %p48, %p49
      %p52 = scmp.ne.s32.totalorder %s35, %s51
      %p53 = scmp.eq.s32.totalorder %s27, 0
      %p54 = por %p52, %p53
      %s56 = sadd.s32 %s55, 1
      %p59 = scmp.eq.s32.totalorder %s21, 1
      %p60 = scmp.ne.s32.totalorder %s55, %s57
      %p61 = scmp.eq.s32.totalorder %s21, 0
      %p62 = por %p60, %p61
      %p63 = scmp.ne.s32.totalorder %s55, %s57
      %p64 = scmp.eq.s32.totalorder %s26, 1
      %p65 = por %p63, %p64
      %p66 = scmp.ne.s32.totalorder %s57, %s58
      %p67 = scmp.eq.s32.totalorder %s26, 0
      %p68 = por %p66, %p67
      %p69 = scmp.ne.s32.totalorder %s57, %s58
      %p70 = scmp.eq.s32.totalorder %s27, 1
      %p71 = por %p69, %p70
      %p73 = scmp.ne.s32.totalorder %s58, %s72
      %p74 = scmp.eq.s32.totalorder %s27, 0
      %p75 = por %p73, %p74
      %s77 = sadd.s32 %s76, 1
      %p80 = scmp.eq.s32.totalorder %s21, 1
      %p81 = scmp.ne.s32.totalorder %s76, %s78
      %p82 = scmp.eq.s32.totalorder %s21, 0
      %p83 = por %p81, %p82
      %p84 = scmp.ne.s32.totalorder %s76, %s78
      %p85 = scmp.eq.s32.totalorder %s26, 1
      %p86 = por %p84, %p85
      %p87 = scmp.ne.s32.totalorder %s78, %s79
      %p88 = scmp.eq.s32.totalorder %s26, 0
      %p89 = por %p87, %p88
      %p90 = scmp.ne.s32.totalorder %s78, %s79
      %p91 = scmp.eq.s32.totalorder %s27, 1
      %p92 = por %p90, %p91
      %p94 = scmp.ne.s32.totalorder %s79, %s93
      %p95 = scmp.eq.s32.totalorder %s27, 0
      %p96 = por %p94, %p95
      %s98 = sadd.s32 %s97, 1
      %p101 = scmp.eq.s32.totalorder %s21, 1
      %p102 = scmp.ne.s32.totalorder %s97, %s99
      %p103 = scmp.eq.s32.totalorder %s21, 0
      %p104 = por %p102, %p103
      %p105 = scmp.ne.s32.totalorder %s97, %s99
      %p106 = scmp.eq.s32.totalorder %s26, 1
      %p107 = por %p105, %p106
      %p108 = scmp.ne.s32.totalorder %s99, %s100
      %p109 = scmp.eq.s32.totalorder %s26, 0
      %p110 = por %p108, %p109
      %p111 = scmp.ne.s32.totalorder %s99, %s100
      %p112 = scmp.eq.s32.totalorder %s27, 1
      %p113 = por %p111, %p112
      %p115 = scmp.ne.s32.totalorder %s100, %s114
      %p116 = scmp.eq.s32.totalorder %s27, 0
      %p117 = por %p115, %p116
      %s119 = sadd.s32 %s118, 1
      %p122 = scmp.eq.s32.totalorder %s21, 1
      %p123 = scmp.ne.s32.totalorder %s118, %s120
      %p124 = scmp.eq.s32.totalorder %s21, 0
      %p125 = por %p123, %p124
      %p126 = scmp.ne.s32.totalorder %s118, %s120
      %p127 = scmp.eq.s32.totalorder %s26, 1
      %p128 = por %p126, %p127
      %p129 = scmp.ne.s32.totalorder %s120, %s121
      %p130 = scmp.eq.s32.totalorder %s26, 0
      %p131 = por %p129, %p130
      %p132 = scmp.ne.s32.totalorder %s120, %s121
      %p133 = scmp.eq.s32.totalorder %s27, 1
      %p134 = por %p132, %p133
      %p136 = scmp.ne.s32.totalorder %s121, %s135
      %p137 = scmp.eq.s32.totalorder %s27, 0
      %p138 = por %p136, %p137
      %s140 = sadd.s32 %s139, 1
      %p143 = scmp.eq.s32.totalorder %s21, 1
      %p144 = scmp.ne.s32.totalorder %s139, %s141
      %p145 = scmp.eq.s32.totalorder %s21, 0
      %p146 = por %p144, %p145
      %p147 = scmp.ne.s32.totalorder %s139, %s141
      %p148 = scmp.eq.s32.totalorder %s26, 1
      %p149 = por %p147, %p148
      %p150 = scmp.ne.s32.totalorder %s141, %s142
      %p151 = scmp.eq.s32.totalorder %s26, 0
      %p152 = por %p150, %p151
      %p153 = scmp.ne.s32.totalorder %s141, %s142
      %p154 = scmp.eq.s32.totalorder %s27, 1
      %p155 = por %p153, %p154
      %p157 = scmp.ne.s32.totalorder %s142, %s156
      %p158 = scmp.eq.s32.totalorder %s27, 0
      %p159 = por %p157, %p158
      %s161 = sadd.s32 %s160, 1
      %p164 = scmp.eq.s32.totalorder %s21, 1
      %p165 = scmp.ne.s32.totalorder %s160, %s162
      %p166 = scmp.eq.s32.totalorder %s21, 0
      %p167 = por %p165, %p166
      %p168 = scmp.ne.s32.totalorder %s160, %s162
      %p169 = scmp.eq.s32.totalorder %s26, 1
      %p170 = por %p168, %p169
      %p171 = scmp.ne.s32.totalorder %s162, %s163
      %p172 = scmp.eq.s32.totalorder %s26, 0
      %p173 = por %p171, %p172
      %p174 = scmp.ne.s32.totalorder %s162, %s163
      %p175 = scmp.eq.s32.totalorder %s27, 1
      %p176 = por %p174, %p175
      %p178 = scmp.ne.s32.totalorder %s163, %s177
      %p179 = scmp.eq.s32.totalorder %s27, 0
      %p180 = por %p178, %p179
      %s182 = sadd.s32 %s181, 1
      %p185 = scmp.eq.s32.totalorder %s21, 1
      %p186 = scmp.ne.s32.totalorder %s181, %s183
      %p187 = scmp.eq.s32.totalorder %s21, 0
      %p188 = por %p186, %p187
      %p189 = scmp.ne.s32.totalorder %s181, %s183
      %p190 = scmp.eq.s32.totalorder %s26, 1
      %p191 = por %p189, %p190
      %p192 = scmp.ne.s32.totalorder %s183, %s184
      %p193 = scmp.eq.s32.totalorder %s26, 0
      %p194 = por %p192, %p193
      %p195 = scmp.ne.s32.totalorder %s183, %s184
      %p196 = scmp.eq.s32.totalorder %s27, 1
      %p197 = por %p195, %p196
      %p199 = scmp.ne.s32.totalorder %s184, %s198
      %p200 = scmp.eq.s32.totalorder %s27, 0
      %p201 = por %p199, %p200
      %s203 = sadd.s32 %s202, 1
      %p206 = scmp.eq.s32.totalorder %s21, 1
      %p207 = scmp.ne.s32.totalorder %s202, %s204
      %p208 = scmp.eq.s32.totalorder %s21, 0
      %p209 = por %p207, %p208
      %p210 = scmp.ne.s32.totalorder %s202, %s204
      %p211 = scmp.eq.s32.totalorder %s26, 1
      %p212 = por %p210, %p211
      %p213 = scmp.ne.s32.totalorder %s204, %s205
      %p214 = scmp.eq.s32.totalorder %s26, 0
      %p215 = por %p213, %p214
      %p216 = scmp.ne.s32.totalorder %s204, %s205
      %p217 = scmp.eq.s32.totalorder %s27, 1
      %p218 = por %p216, %p217
      %p220 = scmp.ne.s32.totalorder %s205, %s219
      %p221 = scmp.eq.s32.totalorder %s27, 0
      %p222 = por %p220, %p221
      %s224 = sadd.s32 %s223, 1
      %p227 = scmp.eq.s32.totalorder %s21, 1
      %p228 = scmp.ne.s32.totalorder %s223, %s225
      %p229 = scmp.eq.s32.totalorder %s21, 0
      %p230 = por %p228, %p229
      %p231 = scmp.ne.s32.totalorder %s223, %s225
      %p232 = scmp.eq.s32.totalorder %s26, 1
      %p233 = por %p231, %p232
      %p234 = scmp.ne.s32.totalorder %s225, %s226
      %p235 = scmp.eq.s32.totalorder %s26, 0
      %p236 = por %p234, %p235
      %p237 = scmp.ne.s32.totalorder %s225, %s226
      %p238 = scmp.eq.s32.totalorder %s27, 1
      %p239 = por %p237, %p238
      %p241 = scmp.ne.s32.totalorder %s226, %s240
      %p242 = scmp.eq.s32.totalorder %s27, 0
      %p243 = por %p241, %p242
      %s245 = sadd.s32 %s244, 1
      %p248 = scmp.eq.s32.totalorder %s21, 1
      %p249 = scmp.ne.s32.totalorder %s244, %s246
      %p250 = scmp.eq.s32.totalorder %s21, 0
      %p251 = por %p249, %p250
      %p252 = scmp.ne.s32.totalorder %s244, %s246
      %p253 = scmp.eq.s32.totalorder %s26, 1
      %p254 = por %p252, %p253
      %p255 = scmp.ne.s32.totalorder %s246, %s247
      %p256 = scmp.eq.s32.totalorder %s26, 0
      %p257 = por %p255, %p256
      %p258 = scmp.ne.s32.totalorder %s246, %s247
      %p259 = scmp.eq.s32.totalorder %s27, 1
      %p260 = por %p258, %p259
      %p262 = scmp.ne.s32.totalorder %s247, %s261
      %p263 = scmp.eq.s32.totalorder %s27, 0
      %p264 = por %p262, %p263
      %s266 = sadd.s32 %s265, 1
      %p269 = scmp.eq.s32.totalorder %s21, 1
      %p270 = scmp.ne.s32.totalorder %s265, %s267
      %p271 = scmp.eq.s32.totalorder %s21, 0
      %p272 = por %p270, %p271
      %p273 = scmp.ne.s32.totalorder %s265, %s267
      %p274 = scmp.eq.s32.totalorder %s26, 1
      %p275 = por %p273, %p274
      %p276 = scmp.ne.s32.totalorder %s267, %s268
      %p277 = scmp.eq.s32.totalorder %s26, 0
      %p278 = por %p276, %p277
      %p279 = scmp.ne.s32.totalorder %s267, %s268
      %p280 = scmp.eq.s32.totalorder %s27, 1
      %p281 = por %p279, %p280
      %p283 = scmp.ne.s32.totalorder %s268, %s282
      %p284 = scmp.eq.s32.totalorder %s27, 0
      %p285 = por %p283, %p284
      %s287 = sadd.s32 %s286, 1
      %p290 = scmp.eq.s32.totalorder %s21, 1
      %p291 = scmp.ne.s32.totalorder %s286, %s288
      %p292 = scmp.eq.s32.totalorder %s21, 0
      %p293 = por %p291, %p292
      %p294 = scmp.ne.s32.totalorder %s286, %s288
      %p295 = scmp.eq.s32.totalorder %s26, 1
      %p296 = por %p294, %p295
      %p297 = scmp.ne.s32.totalorder %s288, %s289
      %p298 = scmp.eq.s32.totalorder %s26, 0
      %p299 = por %p297, %p298
      %p300 = scmp.ne.s32.totalorder %s288, %s289
      %p301 = scmp.eq.s32.totalorder %s27, 1
      %p302 = por %p300, %p301
      %p304 = scmp.ne.s32.totalorder %s289, %s303
      %p305 = scmp.eq.s32.totalorder %s27, 0
      %p306 = por %p304, %p305
      %s307 = ssub.s32 %s21, %s28
      %p308 = scmp.eq.s32.totalorder %s307, 0
      %s310 = sadd.s32 %s309, 1
      %s311 = scalar_select %p308, %s309, %s310
      %p314 = pneg %p308
      %p315 = scmp.eq.s32.totalorder %s21, 1
      %p316 = por %p314, %p315
      %p317 = scmp.ne.s32.totalorder %s309, %s312
      %p318 = scmp.eq.s32.totalorder %s21, 0
      %p319 = por %p317, %p318
      %p320 = scmp.ne.s32.totalorder %s309, %s312
      %p321 = scmp.eq.s32.totalorder %s26, 1
      %p322 = por %p320, %p321
      %p323 = scmp.ne.s32.totalorder %s312, %s313
      %p324 = scmp.eq.s32.totalorder %s26, 0
      %p325 = por %p323, %p324
      %p326 = scmp.ne.s32.totalorder %s312, %s313
      %p327 = scmp.eq.s32.totalorder %s27, 1
      %p328 = por %p326, %p327
      %p330 = scmp.ne.s32.totalorder %s313, %s329
      %p331 = scmp.eq.s32.totalorder %s27, 0
      %p332 = por %p330, %p331
      %p333 = scmp.le.s32.totalorder 1, %s21
      %p334 = scmp.lt.s32.totalorder %s21, 3
      %p335 = pnand %p333, %p334
      %p336 = pneg %p335
      // Predicated region
      $region9: #{double_conv_mobilenet.1} parent=5 // pred_check
        _
      $region10: #{double_conv_mobilenet.1} parent=5 // pred_check_branch
        %338 = sbr.rel (%p335) target = $region12
      $region11: #{double_conv_mobilenet.1} parent=5 // pred_region
        %s339 = ssub.s32 %s21, 1
        // Predicated region
        $region13: #{double_conv_mobilenet.1} parent=11 // pred_check
          %p340 = pneg %p68
        $region14: #{double_conv_mobilenet.1} parent=11 // pred_check_branch
          %342 = sbr.rel (%p340) target = $region16
        $region15: #{double_conv_mobilenet.1} parent=11 // pred_region
          _
        $region16: #{double_conv_mobilenet.1} parent=11 // pred_fallthru
          _
        // Predicated region
        $region17: #{double_conv_mobilenet.1} parent=11 // pred_check
          %p343 = pneg %p89
        $region18: #{double_conv_mobilenet.1} parent=11 // pred_check_branch
          %345 = sbr.rel (%p343) target = $region20
        $region19: #{double_conv_mobilenet.1} parent=11 // pred_region
          _
        $region20: #{double_conv_mobilenet.1} parent=11 // pred_fallthru
          _
        // Predicated region
        $region21: #{double_conv_mobilenet.1} parent=11 // pred_check
          %p346 = pneg %p110
        $region22: #{double_conv_mobilenet.1} parent=11 // pred_check_branch
          %348 = sbr.rel (%p346) target = $region24
        $region23: #{double_conv_mobilenet.1} parent=11 // pred_region
          _
        $region24: #{double_conv_mobilenet.1} parent=11 // pred_fallthru
          _
        // Predicated region
        $region25: #{double_conv_mobilenet.1} parent=11 // pred_check
          %p349 = pneg %p131
        $region26: #{double_conv_mobilenet.1} parent=11 // pred_check_branch
          %351 = sbr.rel (%p349) target = $region28
        $region27: #{double_conv_mobilenet.1} parent=11 // pred_region
          _
        $region28: #{double_conv_mobilenet.1} parent=11 // pred_fallthru
          _
        // Predicated region
        $region29: #{double_conv_mobilenet.1} parent=11 // pred_check
          %p352 = pneg %p152
        $region30: #{double_conv_mobilenet.1} parent=11 // pred_check_branch
          %354 = sbr.rel (%p352) target = $region32
        $region31: #{double_conv_mobilenet.1} parent=11 // pred_region
          _
        $region32: #{double_conv_mobilenet.1} parent=11 // pred_fallthru
          _
        // Predicated region
        $region33: #{double_conv_mobilenet.1} parent=11 // pred_check
          %p355 = pneg %p173
        $region34: #{double_conv_mobilenet.1} parent=11 // pred_check_branch
          %357 = sbr.rel (%p355) target = $region36
        $region35: #{double_conv_mobilenet.1} parent=11 // pred_region
          _
        $region36: #{double_conv_mobilenet.1} parent=11 // pred_fallthru
          _
        // Predicated region
        $region37: #{double_conv_mobilenet.1} parent=11 // pred_check
          %p358 = pneg %p194
        $region38: #{double_conv_mobilenet.1} parent=11 // pred_check_branch
          %360 = sbr.rel (%p358) target = $region40
        $region39: #{double_conv_mobilenet.1} parent=11 // pred_region
          %s362 = ssub.s32 8192, 8192
          %363 = vsyncadd [#allocation3], %s362
          %s364 = sshll.u32 [#allocation2], 4
          %s365 = int_to_ptr.vmem [resolvable:$true] %s364
          %370 = dma.hbm_to_vmem [thread:$0]  %s7, 8192, %s365, [#allocation3], 512, 512, 32
        $region40: #{double_conv_mobilenet.1} parent=11 // pred_fallthru
          _
        // Predicated region
        $region41: #{double_conv_mobilenet.1} parent=11 // pred_check
          %p371 = pneg %p215
        $region42: #{double_conv_mobilenet.1} parent=11 // pred_check_branch
          %373 = sbr.rel (%p371) target = $region44
        $region43: #{double_conv_mobilenet.1} parent=11 // pred_region
          _
        $region44: #{double_conv_mobilenet.1} parent=11 // pred_fallthru
          _
        // Predicated region
        $region45: #{double_conv_mobilenet.1} parent=11 // pred_check
          %p374 = pneg %p236
        $region46: #{double_conv_mobilenet.1} parent=11 // pred_check_branch
          %376 = sbr.rel (%p374) target = $region48
        $region47: #{double_conv_mobilenet.1} parent=11 // pred_region
          %s378 = ssub.s32 1024, 1024
          %379 = vsyncadd [#allocation5], %s378
          %s380 = sshll.u32 [#allocation4], 4
          %s381 = int_to_ptr.vmem [resolvable:$true] %s380
          %386 = dma.hbm_to_vmem [thread:$0]  %s9, 1024, %s381, [#allocation5], 512, 512, 32
        $region48: #{double_conv_mobilenet.1} parent=11 // pred_fallthru
          _
        // Predicated region
        $region49: #{double_conv_mobilenet.1} parent=11 // pred_check
          %p387 = pneg %p257
        $region50: #{double_conv_mobilenet.1} parent=11 // pred_check_branch
          %389 = sbr.rel (%p387) target = $region52
        $region51: #{double_conv_mobilenet.1} parent=11 // pred_region
          _
        $region52: #{double_conv_mobilenet.1} parent=11 // pred_fallthru
          _
        // Predicated region
        $region53: #{double_conv_mobilenet.1} parent=11 // pred_check
          %p390 = pneg %p278
        $region54: #{double_conv_mobilenet.1} parent=11 // pred_check_branch
          %392 = sbr.rel (%p390) target = $region56
        $region55: #{double_conv_mobilenet.1} parent=11 // pred_region
          %s394 = ssub.s32 8192, 8192
          %395 = vsyncadd [#allocation5], %s394
          %s396 = sshll.u32 [#allocation6], 4
          %s397 = int_to_ptr.vmem [resolvable:$true] %s396
          %402 = dma.hbm_to_vmem [thread:$0]  %s11, 8192, %s397, [#allocation5], 128, 128, 8
        $region56: #{double_conv_mobilenet.1} parent=11 // pred_fallthru
          _
        // Predicated region
        $region57: #{double_conv_mobilenet.1} parent=11 // pred_check
          %p403 = pneg %p299
        $region58: #{double_conv_mobilenet.1} parent=11 // pred_check_branch
          %405 = sbr.rel (%p403) target = $region60
        $region59: #{double_conv_mobilenet.1} parent=11 // pred_region
          _
        $region60: #{double_conv_mobilenet.1} parent=11 // pred_fallthru
          _
      $region12: #{double_conv_mobilenet.1} parent=5 // pred_fallthru
        _
      %p406 = scmp.lt.s32.totalorder %s21, 2
      // Predicated region
      $region61: #{double_conv_mobilenet.1} parent=5 // pred_check
        %p407 = pneg %p406
      $region62: #{double_conv_mobilenet.1} parent=5 // pred_check_branch
        %409 = sbr.rel (%p407) target = $region64
      $region63: #{double_conv_mobilenet.1} parent=5 // pred_region
        // Predicated region
        $region65: #{double_conv_mobilenet.1} parent=63 // pred_check
          %p410 = pneg %p41
        $region66: #{double_conv_mobilenet.1} parent=63 // pred_check_branch
          %412 = sbr.rel (%p410) target = $region68
        $region67: #{double_conv_mobilenet.1} parent=63 // pred_region
          %p413 = scmp.lt.s32.totalorder %s21, 1
          %s414 = scalar_select %p413, %s21, 1
          %s415 = smul.addr %s414, 2
          %s416 = smul.addr %s415, 8
          %s417 = scalar_lea.vmem %s0, %s416
        $region68: #{double_conv_mobilenet.1} parent=63 // pred_fallthru
          _
      $region64: #{double_conv_mobilenet.1} parent=5 // pred_fallthru
        _
      %p418 = scmp.le.s32.totalorder 1, %s21
      %p419 = scmp.lt.s32.totalorder %s21, 3
      %p420 = pnand %p418, %p419
      %p421 = pneg %p420
      // Predicated region
      $region69: #{double_conv_mobilenet.1} parent=5 // pred_check
        _
      $region70: #{double_conv_mobilenet.1} parent=5 // pred_check_branch
        %423 = sbr.rel (%p420) target = $region72
      $region71: #{double_conv_mobilenet.1} parent=5 // pred_region
        %s424 = ssub.s32 %s21, 1
        // Predicated region
        $region73: #{double_conv_mobilenet.1} parent=71 // pred_check
          %p425 = pneg %p194
        $region74: #{double_conv_mobilenet.1} parent=71 // pred_check_branch
          %427 = sbr.rel (%p425) target = $region76
        $region75: #{double_conv_mobilenet.1} parent=71 // pred_region
          %428 = dma.done [#allocation3], 8192
        $region76: #{double_conv_mobilenet.1} parent=71 // pred_fallthru
          _
        // Predicated region
        $region77: #{double_conv_mobilenet.1} parent=71 // pred_check
          %p429 = pneg %p236
        $region78: #{double_conv_mobilenet.1} parent=71 // pred_check_branch
          %431 = sbr.rel (%p429) target = $region80
        $region79: #{double_conv_mobilenet.1} parent=71 // pred_region
          %432 = dma.done [#allocation5], 1024
        $region80: #{double_conv_mobilenet.1} parent=71 // pred_fallthru
          _
        // Predicated region
        $region81: #{double_conv_mobilenet.1} parent=71 // pred_check
          %p433 = pneg %p278
        $region82: #{double_conv_mobilenet.1} parent=71 // pred_check_branch
          %435 = sbr.rel (%p433) target = $region84
        $region83: #{double_conv_mobilenet.1} parent=71 // pred_region
          %436 = dma.done [#allocation5], 8192
        $region84: #{double_conv_mobilenet.1} parent=71 // pred_fallthru
          _
        %p437 = scmp.lt.s32.totalorder %s26, 1
        %s438 = scalar_select %p437, %s26, 1
        %s439 = smul.addr %s438, 2
        %s440 = smul.addr %s439, 8
        %s441 = scalar_lea.vmem %s0, %s440
        %p442 = pneg %p47
        %p443 = pneg %p44
        %p444 = pneg %p68
        %p445 = pneg %p65
        %p446 = pneg %p89
        %p447 = pneg %p86
        %p448 = pneg %p110
        %p449 = pneg %p107
        %p450 = pneg %p131
        %p451 = pneg %p128
        %p452 = pneg %p152
        %p453 = pneg %p149
        %p454 = pneg %p173
        %p455 = pneg %p170
        %p456 = pneg %p194
        %p457 = pneg %p191
        %p458 = pneg %p215
        %p459 = pneg %p212
        %p460 = pneg %p236
        %p461 = pneg %p233
        %p462 = pneg %p257
        %p463 = pneg %p254
        %p464 = pneg %p278
        %p465 = pneg %p275
        %p466 = pneg %p299
        %p467 = pneg %p296
        %p468 = pneg %p325
        %p469 = pneg %p322
        %p470 = scmp.lt.s32.totalorder %s26, 1
        %s471 = scalar_select %p470, %s26, 1
        %s472 = smul.addr %s471, 2
        %s473 = smul.addr %s472, 8
        %s474 = scalar_lea.vmem %s13, %s473
        %p475 = scmp.lt.s32.totalorder %s26, 1
        %s476 = scalar_select %p475, %s26, 1
        %s477 = smul.addr %s476, 2
        %s478 = smul.addr %s477, 8
        %s479 = scalar_lea.vmem %s0, %s478
        %p480 = scmp.lt.s32.totalorder %s26, 1
        %s481 = scalar_select %p480, %s26, 1
        %s482 = smul.addr %s481, 2
        %s483 = smul.addr %s482, 8
        %s484 = scalar_lea.vmem %s13, %s483
        %v485 = vld [vmem:[%s479] sm:$0xff]
        %v486 = vld [vmem:[%s479 + $0x8] sm:$0xff]
        %v487 = vld [vmem:[%s1] sm:$0xff]
        %v488 = vld [vmem:[%s1 + $0x8] sm:$0xff]
        %v489 = vld [vmem:[%s1 + $0x10] sm:$0xff]
        %v490 = vld [vmem:[%s1 + $0x18] sm:$0xff]
        %v491 = vld [vmem:[%s1 + $0x20] sm:$0xff]
        %v492 = vld [vmem:[%s1 + $0x28] sm:$0xff]
        %v493 = vld [vmem:[%s1 + $0x30] sm:$0xff]
        %v494 = vld [vmem:[%s1 + $0x38] sm:$0xff]
        %v495 = vld [vmem:[%s1 + $0x40] sm:$0xff]
        %v496 = vld [vmem:[%s1 + $0x48] sm:$0xff]
        %v497 = vld [vmem:[%s1 + $0x50] sm:$0xff]
        %v498 = vld [vmem:[%s1 + $0x58] sm:$0xff]
        %v499 = vld [vmem:[%s1 + $0x60] sm:$0xff]
        %v500 = vld [vmem:[%s1 + $0x68] sm:$0xff]
        %v501 = vld [vmem:[%s1 + $0x70] sm:$0xff]
        %v502 = vld [vmem:[%s1 + $0x78] sm:$0xff]
        %v503 = vld [vmem:[%s2] sm:$0x3]
        %v504 = vld [vmem:[%s3] sm:$0xff]
        %v505 = vld [vmem:[%s3 + $0x8] sm:$0xff]
        %v506 = vld [vmem:[%s3 + $0x10] sm:$0x1]
        %v507 = vld [vmem:[%s3 + $0x18] sm:$0x1]
        %v508 = vld [vmem:[%s4] sm:$0x3]
        %v509 = vld [vmem:[%s5] sm:$0xff]
        %v510 = vld [vmem:[%s5 + $0x8] sm:$0xff]
        %v511 = vld [vmem:[%s5 + $0x10] sm:$0xff]
        %v512 = vld [vmem:[%s5 + $0x18] sm:$0xff]
        %v513 = vld [vmem:[%s5 + $0x20] sm:$0xff]
        %v514 = vld [vmem:[%s5 + $0x28] sm:$0xff]
        %v515 = vld [vmem:[%s5 + $0x30] sm:$0xff]
        %v516 = vld [vmem:[%s5 + $0x38] sm:$0xff]
        %v517 = vld [vmem:[%s5 + $0x40] sm:$0xff]
        %v518 = vld [vmem:[%s5 + $0x48] sm:$0xff]
        %v519 = vld [vmem:[%s5 + $0x50] sm:$0xff]
        %v520 = vld [vmem:[%s5 + $0x58] sm:$0xff]
        %v521 = vld [vmem:[%s5 + $0x60] sm:$0xff]
        %v522 = vld [vmem:[%s5 + $0x68] sm:$0xff]
        %v523 = vld [vmem:[%s5 + $0x70] sm:$0xff]
        %v524 = vld [vmem:[%s5 + $0x78] sm:$0xff]
        %v525 = vld [vmem:[%s5 + $0x80] sm:$0xff]
        %v526 = vld [vmem:[%s5 + $0x88] sm:$0xff]
        %v527 = vld [vmem:[%s5 + $0x90] sm:$0xff]
        %v528 = vld [vmem:[%s5 + $0x98] sm:$0xff]
        %v529 = vld [vmem:[%s5 + $0xa0] sm:$0xff]
        %v530 = vld [vmem:[%s5 + $0xa8] sm:$0xff]
        %v531 = vld [vmem:[%s5 + $0xb0] sm:$0xff]
        %v532 = vld [vmem:[%s5 + $0xb8] sm:$0xff]
        %v533 = vld [vmem:[%s5 + $0xc0] sm:$0xff]
        %v534 = vld [vmem:[%s5 + $0xc8] sm:$0xff]
        %v535 = vld [vmem:[%s5 + $0xd0] sm:$0xff]
        %v536 = vld [vmem:[%s5 + $0xd8] sm:$0xff]
        %v537 = vld [vmem:[%s5 + $0xe0] sm:$0xff]
        %v538 = vld [vmem:[%s5 + $0xe8] sm:$0xff]
        %v539 = vld [vmem:[%s5 + $0xf0] sm:$0xff]
        %v540 = vld [vmem:[%s5 + $0xf8] sm:$0xff]
        %v541 = vld [vmem:[%s6] sm:$0x1]
        %v543 = vlaneseq
        %v544 = vshrl.u32 %v543, 7
        %v545 = vsub.s32 0, %v544
        %v546 = vrot.slane %v503, %v545
        %v547 = vlaneseq
        %v548 = vshrl.u32 %v547, 7
        %v549 = vsub.s32 1, %v548
        %v550 = vrot.slane %v503, %v549
        %vm553 = vcmask 523264
        %v555 = vsel %vm553, %v485, 0
        %v558 = vsel %vm553, %v486, 0
        %560 = vmatprep.subr.mxu0 0.0
        %561 = vmatpush1.msra.mxu0 0.0
        %562 = vmatprep.subr.mxu0 0.0
        %563 = vmatpush1.msra.mxu0 0.0
        %564 = vmatprep.subr.mxu0 0.0
        %565 = vmatpush1.msra.mxu0 0.0
        %566 = vmatprep.subr.mxu0 0.0
        %567 = vmatpush1.msra.mxu0 0.0
        %568 = vmatprep.subr.mxu0 0.0
        %569 = vmatpush1.msra.mxu0 0.0
        %570 = vmatprep.subr.mxu0 0.0
        %571 = vmatpush1.msra.mxu0 0.0
        %572 = vmatprep.subr.mxu0 0.0
        %573 = vmatpush1.msra.mxu0 0.0
        %574 = vmatprep.subr.mxu0 0.0
        %575 = vmatpush1.msra.mxu0 0.0
        %576 = vmatprep.subr.mxu0 %v502
        %577 = vmatpush1.msra.mxu0 %v501
        %578 = vmatprep.subr.mxu0 %v500
        %579 = vmatpush1.msra.mxu0 %v499
        %580 = vmatprep.subr.mxu0 %v498
        %581 = vmatpush1.msra.mxu0 %v497
        %582 = vmatprep.subr.mxu0 %v496
        %583 = vmatpush1.msra.mxu0 %v495
        %584 = vmatprep.subr.mxu0 %v494
        %585 = vmatpush1.msra.mxu0 %v493
        %586 = vmatprep.subr.mxu0 %v492
        %587 = vmatpush1.msra.mxu0 %v491
        %588 = vmatprep.subr.mxu0 %v490
        %589 = vmatpush1.msra.mxu0 %v489
        %590 = vmatprep.subr.mxu0 %v488
        %591 = vmatpush1.msra.mxu0 %v487
        %592 = vmatprep.subr.mxu0 0.0
        %593 = vmatpush2.msra.mxu0 0.0
        %594 = vmatprep.subr.mxu0 0.0
        %595 = vmatpush2.msra.mxu0 0.0
        %596 = vmatprep.subr.mxu0 0.0
        %597 = vmatpush2.msra.mxu0 0.0
        %598 = vmatprep.subr.mxu0 0.0
        %599 = vmatpush2.msra.mxu0 0.0
        %600 = vmatprep.subr.mxu0 0.0
        %601 = vmatpush2.msra.mxu0 0.0
        %602 = vmatprep.subr.mxu0 0.0
        %603 = vmatpush2.msra.mxu0 0.0
        %604 = vmatprep.subr.mxu0 0.0
        %605 = vmatpush2.msra.mxu0 0.0
        %606 = vmatprep.subr.mxu0 0.0
        %607 = vmatpush2.msra.mxu0 0.0
        %608 = vmatprep.subr.mxu0 0.0
        %609 = vmatpush2.msra.mxu0 0.0
        %610 = vmatprep.subr.mxu0 0.0
        %611 = vmatpush2.msra.mxu0 0.0
        %612 = vmatprep.subr.mxu0 0.0
        %613 = vmatpush2.msra.mxu0 0.0
        %614 = vmatprep.subr.mxu0 0.0
        %615 = vmatpush2.msra.mxu0 0.0
        %616 = vmatprep.subr.mxu0 0.0
        %617 = vmatpush2.msra.mxu0 0.0
        %618 = vmatprep.subr.mxu0 0.0
        %619 = vmatpush2.msra.mxu0 0.0
        %620 = vmatprep.subr.mxu0 0.0
        %621 = vmatpush2.msra.mxu0 0.0
        %622 = vmatprep.subr.mxu0 0.0
        %623 = vmatpush2.msra.mxu0 0.0
        %624 = vmatprep.mubr.f32.mxu0 0.0
        %625 = vmatmul.mubr.f32.gmra.mxu0 %v555
        %v626 = vpop.f32.mrf.mxu0
        %v627 = vadd.f32 %v546, %v626
        %v628 = vpop.f32.mrf.mxu0
        %v629 = vadd.f32 %v550, %v628
        %630 = vmatprep.mubr.f32.mxu0 0.0
        %631 = vmatmul.mubr.f32.gmra.mxu0 %v558
        %v632 = vpop.f32.mrf.mxu0
        %v633 = vadd.f32 %v546, %v632
        %v634 = vpop.f32.mrf.mxu0
        %v635 = vadd.f32 %v550, %v634
        %636 = vdwg.mxu0
        %v637 = vmax.f32 %v627, 0.0
        %v638 = vmax.f32 %v629, 0.0
        %v639 = vmax.f32 %v633, 0.0
        %v640 = vmax.f32 %v635, 0.0
        %641 = vrot.lane.b32.xlu0 %v637, 16
        %v642 = vpop.permute.xlu0 %641
        %643 = vrot.lane.b32.xlu0 %v639, 16
        %v644 = vpop.permute.xlu0 %643
        %645 = vrot.lane.b32.xlu0 %v638, 16
        %v646 = vpop.permute.xlu0 %645
        %647 = vrot.lane.b32.xlu0 %v640, 16
        %v648 = vpop.permute.xlu0 %647
        %v649 = vlaneseq
        %v650 = vand.u32 %v649, 127
        %vm651 = vcmp.lt.s32.totalorder %v650, 16
        %v652 = vsel %vm651, %v642, %v646
        %v653 = vsel %vm651, %v644, %v648
        %v654 = vsel %vm651, %v646, %v642
        %v655 = vsel %vm651, %v648, %v644
        %656 = vrot.lane.b32.xlu0 %v637, 112
        %v657 = vpop.permute.xlu0 %656
        %658 = vrot.lane.b32.xlu0 %v639, 112
        %v659 = vpop.permute.xlu0 %658
        %660 = vrot.lane.b32.xlu0 %v638, 112
        %v661 = vpop.permute.xlu0 %660
        %662 = vrot.lane.b32.xlu0 %v640, 112
        %v663 = vpop.permute.xlu0 %662
        %vm664 = vcmp.lt.s32.totalorder %v650, 112
        %v665 = vsel %vm664, %v657, %v661
        %v666 = vsel %vm664, %v659, %v663
        %v667 = vsel %vm664, %v661, %v657
        %v668 = vsel %vm664, %v663, %v659
        %v669 = vlaneseq
        %v670 = vshrl.u32 %v669, 7
        %v671 = vsub.s32 0, %v670
        %v672 = vrot.slane %v504, %v671
        %v673 = vlaneseq
        %v674 = vshrl.u32 %v673, 7
        %v675 = vsub.s32 0, %v674
        %v676 = vrot.slane %v505, %v675
        %v677 = vmul.f32 %v654, %v672
        %v678 = vmul.f32 %v652, %v676
        %v679 = vmul.f32 %v655, %v672
        %v680 = vmul.f32 %v653, %v676
        %v681 = vlaneseq
        %v682 = vshrl.u32 %v681, 7
        %v683 = vsub.s32 1, %v682
        %v684 = vrot.slane %v504, %v683
        %v685 = vlaneseq
        %v686 = vshrl.u32 %v685, 7
        %v687 = vsub.s32 1, %v686
        %v688 = vrot.slane %v505, %v687
        %v689 = vmul.f32 %v637, %v684
        %v690 = vmul.f32 %v638, %v688
        %v691 = vmul.f32 %v639, %v684
        %v692 = vmul.f32 %v640, %v688
        %v693 = vadd.f32 %v677, %v689
        %v694 = vadd.f32 %v678, %v690
        %v695 = vadd.f32 %v679, %v691
        %v696 = vadd.f32 %v680, %v692
        %v697 = vlaneseq
        %v698 = vshrl.u32 %v697, 7
        %v699 = vsub.s32 2, %v698
        %v700 = vrot.slane %v504, %v699
        %v701 = vlaneseq
        %v702 = vshrl.u32 %v701, 7
        %v703 = vsub.s32 2, %v702
        %v704 = vrot.slane %v505, %v703
        %v705 = vmul.f32 %v665, %v700
        %v706 = vmul.f32 %v667, %v704
        %v707 = vmul.f32 %v666, %v700
        %v708 = vmul.f32 %v668, %v704
        %v709 = vadd.f32 %v693, %v705
        %v710 = vadd.f32 %v694, %v706
        %v711 = vadd.f32 %v695, %v707
        %v712 = vadd.f32 %v696, %v708
        %v713 = vlaneseq
        %v714 = vshrl.u32 %v713, 7
        %v715 = vsub.s32 3, %v714
        %v716 = vrot.slane %v504, %v715
        %v717 = vlaneseq
        %v718 = vshrl.u32 %v717, 7
        %v719 = vsub.s32 3, %v718
        %v720 = vrot.slane %v505, %v719
        %v721 = vmul.f32 %v654, %v716
        %v722 = vmul.f32 %v652, %v720
        %v723 = vmul.f32 %v655, %v716
        %v724 = vmul.f32 %v653, %v720
        %v725 = vlaneseq
        %v726 = vshrl.u32 %v725, 7
        %v727 = vsub.s32 4, %v726
        %v728 = vrot.slane %v504, %v727
        %v729 = vlaneseq
        %v730 = vshrl.u32 %v729, 7
        %v731 = vsub.s32 4, %v730
        %v732 = vrot.slane %v505, %v731
        %v733 = vmul.f32 %v637, %v728
        %v734 = vmul.f32 %v638, %v732
        %v735 = vmul.f32 %v639, %v728
        %v736 = vmul.f32 %v640, %v732
        %v737 = vadd.f32 %v721, %v733
        %v738 = vadd.f32 %v722, %v734
        %v739 = vadd.f32 %v723, %v735
        %v740 = vadd.f32 %v724, %v736
        %v741 = vlaneseq
        %v742 = vshrl.u32 %v741, 7
        %v743 = vsub.s32 5, %v742
        %v744 = vrot.slane %v504, %v743
        %v745 = vlaneseq
        %v746 = vshrl.u32 %v745, 7
        %v747 = vsub.s32 5, %v746
        %v748 = vrot.slane %v505, %v747
        %v749 = vmul.f32 %v665, %v744
        %v750 = vmul.f32 %v667, %v748
        %v751 = vmul.f32 %v666, %v744
        %v752 = vmul.f32 %v668, %v748
        %v753 = vadd.f32 %v737, %v749
        %v754 = vadd.f32 %v738, %v750
        %v755 = vadd.f32 %v739, %v751
        %v756 = vadd.f32 %v740, %v752
        %v757 = vlaneseq
        %v758 = vshrl.u32 %v757, 7
        %v759 = vsub.s32 6, %v758
        %v760 = vrot.slane %v504, %v759
        %v761 = vlaneseq
        %v762 = vshrl.u32 %v761, 7
        %v763 = vsub.s32 6, %v762
        %v764 = vrot.slane %v505, %v763
        %v765 = vmul.f32 %v654, %v760
        %v766 = vmul.f32 %v652, %v764
        %v767 = vmul.f32 %v655, %v760
        %v768 = vmul.f32 %v653, %v764
        %v769 = vlaneseq
        %v770 = vshrl.u32 %v769, 7
        %v771 = vsub.s32 7, %v770
        %v772 = vrot.slane %v504, %v771
        %v773 = vlaneseq
        %v774 = vshrl.u32 %v773, 7
        %v775 = vsub.s32 7, %v774
        %v776 = vrot.slane %v505, %v775
        %v777 = vmul.f32 %v637, %v772
        %v778 = vmul.f32 %v638, %v776
        %v779 = vmul.f32 %v639, %v772
        %v780 = vmul.f32 %v640, %v776
        %v781 = vadd.f32 %v765, %v777
        %v782 = vadd.f32 %v766, %v778
        %v783 = vadd.f32 %v767, %v779
        %v784 = vadd.f32 %v768, %v780
        %v785 = vlaneseq
        %v786 = vshrl.u32 %v785, 7
        %v787 = vsub.s32 0, %v786
        %v788 = vrot.slane %v506, %v787
        %v789 = vlaneseq
        %v790 = vshrl.u32 %v789, 7
        %v791 = vsub.s32 0, %v790
        %v792 = vrot.slane %v507, %v791
        %v793 = vmul.f32 %v665, %v788
        %v794 = vmul.f32 %v667, %v792
        %v795 = vmul.f32 %v666, %v788
        %v796 = vmul.f32 %v668, %v792
        %v797 = vadd.f32 %v781, %v793
        %v798 = vadd.f32 %v782, %v794
        %v799 = vadd.f32 %v783, %v795
        %v800 = vadd.f32 %v784, %v796
        %vm805 = vcmask 1040384
        %v806 = vrot.slane %v709, 7
        %v807 = vrot.slane %v710, 7
        %v808 = vrot.slane %v711, 7
        %v809 = vsel %vm805, %v806, %v808
        %v810 = vrot.slane %v712, 7
        %v811 = vsel %vm805, %v807, %v810
        %v816 = vsel %vm805, 0.0, %v806
        %v817 = vsel %vm805, 0.0, %v807
        %v818 = vadd.f32 %v816, %v753
        %v819 = vadd.f32 %v817, %v754
        %v820 = vadd.f32 %v809, %v755
        %v821 = vadd.f32 %v811, %v756
        %vm826 = vcmask 1046528
        %v827 = vrot.slane %v797, 1
        %v828 = vrot.slane %v799, 1
        %v829 = vsel %vm826, %v827, %v828
        %v830 = vrot.slane %v798, 1
        %v831 = vrot.slane %v800, 1
        %v832 = vsel %vm826, %v830, %v831
        %v837 = vsel %vm826, %v828, 0.0
        %v838 = vsel %vm826, %v831, 0.0
        %v839 = vadd.f32 %v818, %v829
        %v840 = vadd.f32 %v819, %v832
        %v841 = vadd.f32 %v820, %v837
        %v842 = vadd.f32 %v821, %v838
        %v844 = vlaneseq
        %v845 = vshrl.u32 %v844, 7
        %v846 = vsub.s32 0, %v845
        %v847 = vrot.slane %v508, %v846
        %v848 = vlaneseq
        %v849 = vshrl.u32 %v848, 7
        %v850 = vsub.s32 1, %v849
        %v851 = vrot.slane %v508, %v850
        %v854 = vadd.f32 %v839, %v847
        %v855 = vadd.f32 %v840, %v851
        %v856 = vadd.f32 %v841, %v847
        %v857 = vadd.f32 %v842, %v851
        %v858 = vmax.f32 %v854, 0.0
        %v859 = vmax.f32 %v855, 0.0
        %v860 = vmax.f32 %v856, 0.0
        %v861 = vmax.f32 %v857, 0.0
        %v863 = vlaneseq
        %v864 = vshrl.u32 %v863, 7
        %v865 = vsub.s32 0, %v864
        %v866 = vrot.slane %v541, %v865
        %868 = vmatprep.subr.mxu0 0.0
        %869 = vmatpush1.msra.mxu0 %v524
        %870 = vmatprep.subr.mxu0 0.0
        %871 = vmatpush1.msra.mxu0 %v523
        %872 = vmatprep.subr.mxu0 0.0
        %873 = vmatpush1.msra.mxu0 %v522
        %874 = vmatprep.subr.mxu0 0.0
        %875 = vmatpush1.msra.mxu0 %v521
        %876 = vmatprep.subr.mxu0 0.0
        %877 = vmatpush1.msra.mxu0 %v520
        %878 = vmatprep.subr.mxu0 0.0
        %879 = vmatpush1.msra.mxu0 %v519
        %880 = vmatprep.subr.mxu0 0.0
        %881 = vmatpush1.msra.mxu0 %v518
        %882 = vmatprep.subr.mxu0 0.0
        %883 = vmatpush1.msra.mxu0 %v517
        %884 = vmatprep.subr.mxu0 0.0
        %885 = vmatpush1.msra.mxu0 %v516
        %886 = vmatprep.subr.mxu0 0.0
        %887 = vmatpush1.msra.mxu0 %v515
        %888 = vmatprep.subr.mxu0 0.0
        %889 = vmatpush1.msra.mxu0 %v514
        %890 = vmatprep.subr.mxu0 0.0
        %891 = vmatpush1.msra.mxu0 %v513
        %892 = vmatprep.subr.mxu0 0.0
        %893 = vmatpush1.msra.mxu0 %v512
        %894 = vmatprep.subr.mxu0 0.0
        %895 = vmatpush1.msra.mxu0 %v511
        %896 = vmatprep.subr.mxu0 0.0
        %897 = vmatpush1.msra.mxu0 %v510
        %898 = vmatprep.subr.mxu0 0.0
        %899 = vmatpush1.msra.mxu0 %v509
        %900 = vmatprep.subr.mxu0 0.0
        %901 = vmatpush2.msra.mxu0 %v540
        %902 = vmatprep.subr.mxu0 0.0
        %903 = vmatpush2.msra.mxu0 %v539
        %904 = vmatprep.subr.mxu0 0.0
        %905 = vmatpush2.msra.mxu0 %v538
        %906 = vmatprep.subr.mxu0 0.0
        %907 = vmatpush2.msra.mxu0 %v537
        %908 = vmatprep.subr.mxu0 0.0
        %909 = vmatpush2.msra.mxu0 %v536
        %910 = vmatprep.subr.mxu0 0.0
        %911 = vmatpush2.msra.mxu0 %v535
        %912 = vmatprep.subr.mxu0 0.0
        %913 = vmatpush2.msra.mxu0 %v534
        %914 = vmatprep.subr.mxu0 0.0
        %915 = vmatpush2.msra.mxu0 %v533
        %916 = vmatprep.subr.mxu0 0.0
        %917 = vmatpush2.msra.mxu0 %v532
        %918 = vmatprep.subr.mxu0 0.0
        %919 = vmatpush2.msra.mxu0 %v531
        %920 = vmatprep.subr.mxu0 0.0
        %921 = vmatpush2.msra.mxu0 %v530
        %922 = vmatprep.subr.mxu0 0.0
        %923 = vmatpush2.msra.mxu0 %v529
        %924 = vmatprep.subr.mxu0 0.0
        %925 = vmatpush2.msra.mxu0 %v528
        %926 = vmatprep.subr.mxu0 0.0
        %927 = vmatpush2.msra.mxu0 %v527
        %928 = vmatprep.subr.mxu0 0.0
        %929 = vmatpush2.msra.mxu0 %v526
        %930 = vmatprep.subr.mxu0 0.0
        %931 = vmatpush2.msra.mxu0 %v525
        %932 = vmatprep.mubr.f32.mxu0 %v859
        %933 = vmatmul.mubr.f32.gmra.mxu0 %v858
        %v934 = vpop.f32.mrf.mxu0
        %v935 = vadd.f32 %v866, %v934
        %v936 = vpop.f32.mrf.mxu0
        %937 = vmatprep.mubr.f32.mxu0 %v861
        %938 = vmatmul.mubr.f32.gmra.mxu0 %v860
        %v939 = vpop.f32.mrf.mxu0
        %v940 = vadd.f32 %v866, %v939
        %v941 = vpop.f32.mrf.mxu0
        %942 = vdwg.mxu0
        %v943 = vmax.f32 %v935, 0.0
        %v944 = vmax.f32 %v940, 0.0
        %v945 = vld [vmem:[#allocation2] sm:$0xff]
        %v946 = vld [vmem:[#allocation2 + $0x8] sm:$0xff]
        %v947 = vld [vmem:[#allocation2 + $0x10] sm:$0xff]
        %v948 = vld [vmem:[#allocation2 + $0x18] sm:$0xff]
        %v949 = vld [vmem:[#allocation2 + $0x20] sm:$0xff]
        %v950 = vld [vmem:[#allocation2 + $0x28] sm:$0xff]
        %v951 = vld [vmem:[#allocation2 + $0x30] sm:$0xff]
        %v952 = vld [vmem:[#allocation2 + $0x38] sm:$0xff]
        %v953 = vld [vmem:[#allocation2 + $0x40] sm:$0xff]
        %v954 = vld [vmem:[#allocation2 + $0x48] sm:$0xff]
        %v955 = vld [vmem:[#allocation2 + $0x50] sm:$0xff]
        %v956 = vld [vmem:[#allocation2 + $0x58] sm:$0xff]
        %v957 = vld [vmem:[#allocation2 + $0x60] sm:$0xff]
        %v958 = vld [vmem:[#allocation2 + $0x68] sm:$0xff]
        %v959 = vld [vmem:[#allocation2 + $0x70] sm:$0xff]
        %v960 = vld [vmem:[#allocation2 + $0x78] sm:$0xff]
        %v961 = vld [vmem:[#allocation2 + $0x80] sm:$0xff]
        %v962 = vld [vmem:[#allocation2 + $0x88] sm:$0xff]
        %v963 = vld [vmem:[#allocation2 + $0x90] sm:$0xff]
        %v964 = vld [vmem:[#allocation2 + $0x98] sm:$0xff]
        %v965 = vld [vmem:[#allocation2 + $0xa0] sm:$0xff]
        %v966 = vld [vmem:[#allocation2 + $0xa8] sm:$0xff]
        %v967 = vld [vmem:[#allocation2 + $0xb0] sm:$0xff]
        %v968 = vld [vmem:[#allocation2 + $0xb8] sm:$0xff]
        %v969 = vld [vmem:[#allocation2 + $0xc0] sm:$0xff]
        %v970 = vld [vmem:[#allocation2 + $0xc8] sm:$0xff]
        %v971 = vld [vmem:[#allocation2 + $0xd0] sm:$0xff]
        %v972 = vld [vmem:[#allocation2 + $0xd8] sm:$0xff]
        %v973 = vld [vmem:[#allocation2 + $0xe0] sm:$0xff]
        %v974 = vld [vmem:[#allocation2 + $0xe8] sm:$0xff]
        %v975 = vld [vmem:[#allocation2 + $0xf0] sm:$0xff]
        %v976 = vld [vmem:[#allocation2 + $0xf8] sm:$0xff]
        %v977 = vld [vmem:[#allocation2 + $0x100] sm:$0xff]
        %v978 = vld [vmem:[#allocation2 + $0x108] sm:$0xff]
        %v979 = vld [vmem:[#allocation2 + $0x110] sm:$0xff]
        %v980 = vld [vmem:[#allocation2 + $0x118] sm:$0xff]
        %v981 = vld [vmem:[#allocation2 + $0x120] sm:$0xff]
        %v982 = vld [vmem:[#allocation2 + $0x128] sm:$0xff]
        %v983 = vld [vmem:[#allocation2 + $0x130] sm:$0xff]
        %v984 = vld [vmem:[#allocation2 + $0x138] sm:$0xff]
        %v985 = vld [vmem:[#allocation2 + $0x140] sm:$0xff]
        %v986 = vld [vmem:[#allocation2 + $0x148] sm:$0xff]
        %v987 = vld [vmem:[#allocation2 + $0x150] sm:$0xff]
        %v988 = vld [vmem:[#allocation2 + $0x158] sm:$0xff]
        %v989 = vld [vmem:[#allocation2 + $0x160] sm:$0xff]
        %v990 = vld [vmem:[#allocation2 + $0x168] sm:$0xff]
        %v991 = vld [vmem:[#allocation2 + $0x170] sm:$0xff]
        %v992 = vld [vmem:[#allocation2 + $0x178] sm:$0xff]
        %v993 = vld [vmem:[#allocation2 + $0x180] sm:$0xff]
        %v994 = vld [vmem:[#allocation2 + $0x188] sm:$0xff]
        %v995 = vld [vmem:[#allocation2 + $0x190] sm:$0xff]
        %v996 = vld [vmem:[#allocation2 + $0x198] sm:$0xff]
        %v997 = vld [vmem:[#allocation2 + $0x1a0] sm:$0xff]
        %v998 = vld [vmem:[#allocation2 + $0x1a8] sm:$0xff]
        %v999 = vld [vmem:[#allocation2 + $0x1b0] sm:$0xff]
        %v1000 = vld [vmem:[#allocation2 + $0x1b8] sm:$0xff]
        %v1001 = vld [vmem:[#allocation2 + $0x1c0] sm:$0xff]
        %v1002 = vld [vmem:[#allocation2 + $0x1c8] sm:$0xff]
        %v1003 = vld [vmem:[#allocation2 + $0x1d0] sm:$0xff]
        %v1004 = vld [vmem:[#allocation2 + $0x1d8] sm:$0xff]
        %v1005 = vld [vmem:[#allocation2 + $0x1e0] sm:$0xff]
        %v1006 = vld [vmem:[#allocation2 + $0x1e8] sm:$0xff]
        %v1007 = vld [vmem:[#allocation2 + $0x1f0] sm:$0xff]
        %v1008 = vld [vmem:[#allocation2 + $0x1f8] sm:$0xff]
        %v1009 = vld [vmem:[%s8] sm:$0xf]
        %v1010 = vld [vmem:[#allocation4] sm:$0xff]
        %v1011 = vld [vmem:[#allocation4 + $0x8] sm:$0xff]
        %v1012 = vld [vmem:[#allocation4 + $0x10] sm:$0xff]
        %v1013 = vld [vmem:[#allocation4 + $0x18] sm:$0xff]
        %v1014 = vld [vmem:[#allocation4 + $0x20] sm:$0x1]
        %v1015 = vld [vmem:[#allocation4 + $0x28] sm:$0x1]
        %v1016 = vld [vmem:[#allocation4 + $0x30] sm:$0x1]
        %v1017 = vld [vmem:[#allocation4 + $0x38] sm:$0x1]
        %v1018 = vld [vmem:[%s10] sm:$0xf]
        %v1019 = vld [vmem:[#allocation6] sm:$0xff]
        %v1020 = vld [vmem:[#allocation6 + $0x8] sm:$0xff]
        %v1021 = vld [vmem:[#allocation6 + $0x10] sm:$0xff]
        %v1022 = vld [vmem:[#allocation6 + $0x18] sm:$0xff]
        %v1023 = vld [vmem:[#allocation6 + $0x20] sm:$0xff]
        %v1024 = vld [vmem:[#allocation6 + $0x28] sm:$0xff]
        %v1025 = vld [vmem:[#allocation6 + $0x30] sm:$0xff]
        %v1026 = vld [vmem:[#allocation6 + $0x38] sm:$0xff]
        %v1027 = vld [vmem:[#allocation6 + $0x40] sm:$0xff]
        %v1028 = vld [vmem:[#allocation6 + $0x48] sm:$0xff]
        %v1029 = vld [vmem:[#allocation6 + $0x50] sm:$0xff]
        %v1030 = vld [vmem:[#allocation6 + $0x58] sm:$0xff]
        %v1031 = vld [vmem:[#allocation6 + $0x60] sm:$0xff]
        %v1032 = vld [vmem:[#allocation6 + $0x68] sm:$0xff]
        %v1033 = vld [vmem:[#allocation6 + $0x70] sm:$0xff]
        %v1034 = vld [vmem:[#allocation6 + $0x78] sm:$0xff]
        %v1035 = vld [vmem:[#allocation6 + $0x80] sm:$0xff]
        %v1036 = vld [vmem:[#allocation6 + $0x88] sm:$0xff]
        %v1037 = vld [vmem:[#allocation6 + $0x90] sm:$0xff]
        %v1038 = vld [vmem:[#allocation6 + $0x98] sm:$0xff]
        %v1039 = vld [vmem:[#allocation6 + $0xa0] sm:$0xff]
        %v1040 = vld [vmem:[#allocation6 + $0xa8] sm:$0xff]
        %v1041 = vld [vmem:[#allocation6 + $0xb0] sm:$0xff]
        %v1042 = vld [vmem:[#allocation6 + $0xb8] sm:$0xff]
        %v1043 = vld [vmem:[#allocation6 + $0xc0] sm:$0xff]
        %v1044 = vld [vmem:[#allocation6 + $0xc8] sm:$0xff]
        %v1045 = vld [vmem:[#allocation6 + $0xd0] sm:$0xff]
        %v1046 = vld [vmem:[#allocation6 + $0xd8] sm:$0xff]
        %v1047 = vld [vmem:[#allocation6 + $0xe0] sm:$0xff]
        %v1048 = vld [vmem:[#allocation6 + $0xe8] sm:$0xff]
        %v1049 = vld [vmem:[#allocation6 + $0xf0] sm:$0xff]
        %v1050 = vld [vmem:[#allocation6 + $0xf8] sm:$0xff]
        %v1051 = vld [vmem:[#allocation6 + $0x100] sm:$0xff]
        %v1052 = vld [vmem:[#allocation6 + $0x108] sm:$0xff]
        %v1053 = vld [vmem:[#allocation6 + $0x110] sm:$0xff]
        %v1054 = vld [vmem:[#allocation6 + $0x118] sm:$0xff]
        %v1055 = vld [vmem:[#allocation6 + $0x120] sm:$0xff]
        %v1056 = vld [vmem:[#allocation6 + $0x128] sm:$0xff]
        %v1057 = vld [vmem:[#allocation6 + $0x130] sm:$0xff]
        %v1058 = vld [vmem:[#allocation6 + $0x138] sm:$0xff]
        %v1059 = vld [vmem:[#allocation6 + $0x140] sm:$0xff]
        %v1060 = vld [vmem:[#allocation6 + $0x148] sm:$0xff]
        %v1061 = vld [vmem:[#allocation6 + $0x150] sm:$0xff]
        %v1062 = vld [vmem:[#allocation6 + $0x158] sm:$0xff]
        %v1063 = vld [vmem:[#allocation6 + $0x160] sm:$0xff]
        %v1064 = vld [vmem:[#allocation6 + $0x168] sm:$0xff]
        %v1065 = vld [vmem:[#allocation6 + $0x170] sm:$0xff]
        %v1066 = vld [vmem:[#allocation6 + $0x178] sm:$0xff]
        %v1067 = vld [vmem:[#allocation6 + $0x180] sm:$0xff]
        %v1068 = vld [vmem:[#allocation6 + $0x188] sm:$0xff]
        %v1069 = vld [vmem:[#allocation6 + $0x190] sm:$0xff]
        %v1070 = vld [vmem:[#allocation6 + $0x198] sm:$0xff]
        %v1071 = vld [vmem:[#allocation6 + $0x1a0] sm:$0xff]
        %v1072 = vld [vmem:[#allocation6 + $0x1a8] sm:$0xff]
        %v1073 = vld [vmem:[#allocation6 + $0x1b0] sm:$0xff]
        %v1074 = vld [vmem:[#allocation6 + $0x1b8] sm:$0xff]
        %v1075 = vld [vmem:[#allocation6 + $0x1c0] sm:$0xff]
        %v1076 = vld [vmem:[#allocation6 + $0x1c8] sm:$0xff]
        %v1077 = vld [vmem:[#allocation6 + $0x1d0] sm:$0xff]
        %v1078 = vld [vmem:[#allocation6 + $0x1d8] sm:$0xff]
        %v1079 = vld [vmem:[#allocation6 + $0x1e0] sm:$0xff]
        %v1080 = vld [vmem:[#allocation6 + $0x1e8] sm:$0xff]
        %v1081 = vld [vmem:[#allocation6 + $0x1f0] sm:$0xff]
        %v1082 = vld [vmem:[#allocation6 + $0x1f8] sm:$0xff]
        %v1083 = vld [vmem:[%s12] sm:$0x1]
        %v1085 = vlaneseq
        %v1086 = vshrl.u32 %v1085, 7
        %v1087 = vsub.s32 0, %v1086
        %v1088 = vrot.slane %v1009, %v1087
        %v1089 = vlaneseq
        %v1090 = vshrl.u32 %v1089, 7
        %v1091 = vsub.s32 1, %v1090
        %v1092 = vrot.slane %v1009, %v1091
        %v1093 = vlaneseq
        %v1094 = vshrl.u32 %v1093, 7
        %v1095 = vsub.s32 2, %v1094
        %v1096 = vrot.slane %v1009, %v1095
        %v1097 = vlaneseq
        %v1098 = vshrl.u32 %v1097, 7
        %v1099 = vsub.s32 3, %v1098
        %v1100 = vrot.slane %v1009, %v1099
        %1105 = vmatprep.subr.mxu0 %v1006
        %1106 = vmatpush1.msra.mxu0 %v1005
        %1107 = vmatprep.subr.mxu0 %v1002
        %1108 = vmatpush1.msra.mxu0 %v1001
        %1109 = vmatprep.subr.mxu0 %v998
        %1110 = vmatpush1.msra.mxu0 %v997
        %1111 = vmatprep.subr.mxu0 %v994
        %1112 = vmatpush1.msra.mxu0 %v993
        %1113 = vmatprep.subr.mxu0 %v990
        %1114 = vmatpush1.msra.mxu0 %v989
        %1115 = vmatprep.subr.mxu0 %v986
        %1116 = vmatpush1.msra.mxu0 %v985
        %1117 = vmatprep.subr.mxu0 %v982
        %1118 = vmatpush1.msra.mxu0 %v981
        %1119 = vmatprep.subr.mxu0 %v978
        %1120 = vmatpush1.msra.mxu0 %v977
        %1121 = vmatprep.subr.mxu0 %v974
        %1122 = vmatpush1.msra.mxu0 %v973
        %1123 = vmatprep.subr.mxu0 %v970
        %1124 = vmatpush1.msra.mxu0 %v969
        %1125 = vmatprep.subr.mxu0 %v966
        %1126 = vmatpush1.msra.mxu0 %v965
        %1127 = vmatprep.subr.mxu0 %v962
        %1128 = vmatpush1.msra.mxu0 %v961
        %1129 = vmatprep.subr.mxu0 %v958
        %1130 = vmatpush1.msra.mxu0 %v957
        %1131 = vmatprep.subr.mxu0 %v954
        %1132 = vmatpush1.msra.mxu0 %v953
        %1133 = vmatprep.subr.mxu0 %v950
        %1134 = vmatpush1.msra.mxu0 %v949
        %1135 = vmatprep.subr.mxu0 %v946
        %1136 = vmatpush1.msra.mxu0 %v945
        %1137 = vmatprep.subr.mxu0 0.0
        %1138 = vmatpush2.msra.mxu0 0.0
        %1139 = vmatprep.subr.mxu0 0.0
        %1140 = vmatpush2.msra.mxu0 0.0
        %1141 = vmatprep.subr.mxu0 0.0
        %1142 = vmatpush2.msra.mxu0 0.0
        %1143 = vmatprep.subr.mxu0 0.0
        %1144 = vmatpush2.msra.mxu0 0.0
        %1145 = vmatprep.subr.mxu0 0.0
        %1146 = vmatpush2.msra.mxu0 0.0
        %1147 = vmatprep.subr.mxu0 0.0
        %1148 = vmatpush2.msra.mxu0 0.0
        %1149 = vmatprep.subr.mxu0 0.0
        %1150 = vmatpush2.msra.mxu0 0.0
        %1151 = vmatprep.subr.mxu0 0.0
        %1152 = vmatpush2.msra.mxu0 0.0
        %1153 = vmatprep.subr.mxu0 0.0
        %1154 = vmatpush2.msra.mxu0 0.0
        %1155 = vmatprep.subr.mxu0 0.0
        %1156 = vmatpush2.msra.mxu0 0.0
        %1157 = vmatprep.subr.mxu0 0.0
        %1158 = vmatpush2.msra.mxu0 0.0
        %1159 = vmatprep.subr.mxu0 0.0
        %1160 = vmatpush2.msra.mxu0 0.0
        %1161 = vmatprep.subr.mxu0 0.0
        %1162 = vmatpush2.msra.mxu0 0.0
        %1163 = vmatprep.subr.mxu0 0.0
        %1164 = vmatpush2.msra.mxu0 0.0
        %1165 = vmatprep.subr.mxu0 0.0
        %1166 = vmatpush2.msra.mxu0 0.0
        %1167 = vmatprep.subr.mxu0 0.0
        %1168 = vmatpush2.msra.mxu0 0.0
        %1169 = vmatprep.mubr.f32.mxu0 0.0
        %1170 = vmatmul.mubr.f32.gmra.mxu0 %v943
        %v1171 = vpop.f32.mrf.mxu0
        %v1172 = vadd.f32 %v1088, %v1171
        %v1173 = vpop.f32.mrf.mxu0
        %v1174 = vadd.f32 %v1092, %v1173
        %1175 = vmatprep.mubr.f32.mxu0 0.0
        %1176 = vmatmul.mubr.f32.gmra.mxu0 %v944
        %v1177 = vpop.f32.mrf.mxu0
        %v1178 = vadd.f32 %v1088, %v1177
        %v1179 = vpop.f32.mrf.mxu0
        %v1180 = vadd.f32 %v1092, %v1179
        %1181 = vdwg.mxu0
        %1182 = vmatprep.subr.mxu0 %v1008
        %1183 = vmatpush1.msra.mxu0 %v1007
        %1184 = vmatprep.subr.mxu0 %v1004
        %1185 = vmatpush1.msra.mxu0 %v1003
        %1186 = vmatprep.subr.mxu0 %v1000
        %1187 = vmatpush1.msra.mxu0 %v999
        %1188 = vmatprep.subr.mxu0 %v996
        %1189 = vmatpush1.msra.mxu0 %v995
        %1190 = vmatprep.subr.mxu0 %v992
        %1191 = vmatpush1.msra.mxu0 %v991
        %1192 = vmatprep.subr.mxu0 %v988
        %1193 = vmatpush1.msra.mxu0 %v987
        %1194 = vmatprep.subr.mxu0 %v984
        %1195 = vmatpush1.msra.mxu0 %v983
        %1196 = vmatprep.subr.mxu0 %v980
        %1197 = vmatpush1.msra.mxu0 %v979
        %1198 = vmatprep.subr.mxu0 %v976
        %1199 = vmatpush1.msra.mxu0 %v975
        %1200 = vmatprep.subr.mxu0 %v972
        %1201 = vmatpush1.msra.mxu0 %v971
        %1202 = vmatprep.subr.mxu0 %v968
        %1203 = vmatpush1.msra.mxu0 %v967
        %1204 = vmatprep.subr.mxu0 %v964
        %1205 = vmatpush1.msra.mxu0 %v963
        %1206 = vmatprep.subr.mxu0 %v960
        %1207 = vmatpush1.msra.mxu0 %v959
        %1208 = vmatprep.subr.mxu0 %v956
        %1209 = vmatpush1.msra.mxu0 %v955
        %1210 = vmatprep.subr.mxu0 %v952
        %1211 = vmatpush1.msra.mxu0 %v951
        %1212 = vmatprep.subr.mxu0 %v948
        %1213 = vmatpush1.msra.mxu0 %v947
        %1214 = vmatprep.subr.mxu0 0.0
        %1215 = vmatpush2.msra.mxu0 0.0
        %1216 = vmatprep.subr.mxu0 0.0
        %1217 = vmatpush2.msra.mxu0 0.0
        %1218 = vmatprep.subr.mxu0 0.0
        %1219 = vmatpush2.msra.mxu0 0.0
        %1220 = vmatprep.subr.mxu0 0.0
        %1221 = vmatpush2.msra.mxu0 0.0
        %1222 = vmatprep.subr.mxu0 0.0
        %1223 = vmatpush2.msra.mxu0 0.0
        %1224 = vmatprep.subr.mxu0 0.0
        %1225 = vmatpush2.msra.mxu0 0.0
        %1226 = vmatprep.subr.mxu0 0.0
        %1227 = vmatpush2.msra.mxu0 0.0
        %1228 = vmatprep.subr.mxu0 0.0
        %1229 = vmatpush2.msra.mxu0 0.0
        %1230 = vmatprep.subr.mxu0 0.0
        %1231 = vmatpush2.msra.mxu0 0.0
        %1232 = vmatprep.subr.mxu0 0.0
        %1233 = vmatpush2.msra.mxu0 0.0
        %1234 = vmatprep.subr.mxu0 0.0
        %1235 = vmatpush2.msra.mxu0 0.0
        %1236 = vmatprep.subr.mxu0 0.0
        %1237 = vmatpush2.msra.mxu0 0.0
        %1238 = vmatprep.subr.mxu0 0.0
        %1239 = vmatpush2.msra.mxu0 0.0
        %1240 = vmatprep.subr.mxu0 0.0
        %1241 = vmatpush2.msra.mxu0 0.0
        %1242 = vmatprep.subr.mxu0 0.0
        %1243 = vmatpush2.msra.mxu0 0.0
        %1244 = vmatprep.subr.mxu0 0.0
        %1245 = vmatpush2.msra.mxu0 0.0
        %1246 = vmatprep.mubr.f32.mxu0 0.0
        %1247 = vmatmul.mubr.f32.gmra.mxu0 %v943
        %v1248 = vpop.f32.mrf.mxu0
        %v1249 = vadd.f32 %v1096, %v1248
        %v1250 = vpop.f32.mrf.mxu0
        %v1251 = vadd.f32 %v1100, %v1250
        %1252 = vmatprep.mubr.f32.mxu0 0.0
        %1253 = vmatmul.mubr.f32.gmra.mxu0 %v944
        %v1254 = vpop.f32.mrf.mxu0
        %v1255 = vadd.f32 %v1096, %v1254
        %v1256 = vpop.f32.mrf.mxu0
        %v1257 = vadd.f32 %v1100, %v1256
        %1258 = vdwg.mxu0
        %v1259 = vmax.f32 %v1172, 0.0
        %v1260 = vmax.f32 %v1174, 0.0
        %v1261 = vmax.f32 %v1249, 0.0
        %v1262 = vmax.f32 %v1251, 0.0
        %v1263 = vmax.f32 %v1178, 0.0
        %v1264 = vmax.f32 %v1180, 0.0
        %v1265 = vmax.f32 %v1255, 0.0
        %v1266 = vmax.f32 %v1257, 0.0
        %1267 = vrot.lane.b32.xlu0 %v1259, 32
        %v1268 = vpop.permute.xlu0 %1267
        %1269 = vrot.lane.b32.xlu0 %v1263, 32
        %v1270 = vpop.permute.xlu0 %1269
        %1271 = vrot.lane.b32.xlu0 %v1260, 32
        %v1272 = vpop.permute.xlu0 %1271
        %1273 = vrot.lane.b32.xlu0 %v1264, 32
        %v1274 = vpop.permute.xlu0 %1273
        %1275 = vrot.lane.b32.xlu0 %v1261, 32
        %v1276 = vpop.permute.xlu0 %1275
        %1277 = vrot.lane.b32.xlu0 %v1265, 32
        %v1278 = vpop.permute.xlu0 %1277
        %1279 = vrot.lane.b32.xlu0 %v1262, 32
        %v1280 = vpop.permute.xlu0 %1279
        %1281 = vrot.lane.b32.xlu0 %v1266, 32
        %v1282 = vpop.permute.xlu0 %1281
        %vm1283 = vcmp.lt.s32.totalorder %v650, 32
        %v1284 = vsel %vm1283, %v1276, %v1280
        %v1285 = vsel %vm1283, %v1278, %v1282
        %v1286 = vsel %vm1283, %v1272, %v1276
        %v1287 = vsel %vm1283, %v1274, %v1278
        %v1288 = vsel %vm1283, %v1268, %v1272
        %v1289 = vsel %vm1283, %v1270, %v1274
        %v1290 = vsel %vm1283, %v1280, %v1268
        %v1291 = vsel %vm1283, %v1282, %v1270
        %1292 = vrot.lane.b32.xlu0 %v1259, 96
        %v1293 = vpop.permute.xlu0 %1292
        %1294 = vrot.lane.b32.xlu0 %v1263, 96
        %v1295 = vpop.permute.xlu0 %1294
        %1296 = vrot.lane.b32.xlu0 %v1260, 96
        %v1297 = vpop.permute.xlu0 %1296
        %1298 = vrot.lane.b32.xlu0 %v1264, 96
        %v1299 = vpop.permute.xlu0 %1298
        %1300 = vrot.lane.b32.xlu0 %v1261, 96
        %v1301 = vpop.permute.xlu0 %1300
        %1302 = vrot.lane.b32.xlu0 %v1265, 96
        %v1303 = vpop.permute.xlu0 %1302
        %1304 = vrot.lane.b32.xlu0 %v1262, 96
        %v1305 = vpop.permute.xlu0 %1304
        %1306 = vrot.lane.b32.xlu0 %v1266, 96
        %v1307 = vpop.permute.xlu0 %1306
        %vm1308 = vcmp.lt.s32.totalorder %v650, 96
        %v1309 = vsel %vm1308, %v1301, %v1305
        %v1310 = vsel %vm1308, %v1303, %v1307
        %v1311 = vsel %vm1308, %v1297, %v1301
        %v1312 = vsel %vm1308, %v1299, %v1303
        %v1313 = vsel %vm1308, %v1293, %v1297
        %v1314 = vsel %vm1308, %v1295, %v1299
        %v1315 = vsel %vm1308, %v1305, %v1293
        %v1316 = vsel %vm1308, %v1307, %v1295
        %v1317 = vlaneseq
        %v1318 = vshrl.u32 %v1317, 7
        %v1319 = vsub.s32 0, %v1318
        %v1320 = vrot.slane %v1010, %v1319
        %v1321 = vlaneseq
        %v1322 = vshrl.u32 %v1321, 7
        %v1323 = vsub.s32 0, %v1322
        %v1324 = vrot.slane %v1011, %v1323
        %v1325 = vlaneseq
        %v1326 = vshrl.u32 %v1325, 7
        %v1327 = vsub.s32 0, %v1326
        %v1328 = vrot.slane %v1012, %v1327
        %v1329 = vlaneseq
        %v1330 = vshrl.u32 %v1329, 7
        %v1331 = vsub.s32 0, %v1330
        %v1332 = vrot.slane %v1013, %v1331
        %v1333 = vmul.f32 %v1290, %v1320
        %v1334 = vmul.f32 %v1288, %v1324
        %v1335 = vmul.f32 %v1286, %v1328
        %v1336 = vmul.f32 %v1284, %v1332
        %v1337 = vmul.f32 %v1291, %v1320
        %v1338 = vmul.f32 %v1289, %v1324
        %v1339 = vmul.f32 %v1287, %v1328
        %v1340 = vmul.f32 %v1285, %v1332
        %v1341 = vlaneseq
        %v1342 = vshrl.u32 %v1341, 7
        %v1343 = vsub.s32 1, %v1342
        %v1344 = vrot.slane %v1010, %v1343
        %v1345 = vlaneseq
        %v1346 = vshrl.u32 %v1345, 7
        %v1347 = vsub.s32 1, %v1346
        %v1348 = vrot.slane %v1011, %v1347
        %v1349 = vlaneseq
        %v1350 = vshrl.u32 %v1349, 7
        %v1351 = vsub.s32 1, %v1350
        %v1352 = vrot.slane %v1012, %v1351
        %v1353 = vlaneseq
        %v1354 = vshrl.u32 %v1353, 7
        %v1355 = vsub.s32 1, %v1354
        %v1356 = vrot.slane %v1013, %v1355
        %v1357 = vmul.f32 %v1259, %v1344
        %v1358 = vmul.f32 %v1260, %v1348
        %v1359 = vmul.f32 %v1261, %v1352
        %v1360 = vmul.f32 %v1262, %v1356
        %v1361 = vmul.f32 %v1263, %v1344
        %v1362 = vmul.f32 %v1264, %v1348
        %v1363 = vmul.f32 %v1265, %v1352
        %v1364 = vmul.f32 %v1266, %v1356
        %v1365 = vadd.f32 %v1333, %v1357
        %v1366 = vadd.f32 %v1334, %v1358
        %v1367 = vadd.f32 %v1335, %v1359
        %v1368 = vadd.f32 %v1336, %v1360
        %v1369 = vadd.f32 %v1337, %v1361
        %v1370 = vadd.f32 %v1338, %v1362
        %v1371 = vadd.f32 %v1339, %v1363
        %v1372 = vadd.f32 %v1340, %v1364
        %v1373 = vlaneseq
        %v1374 = vshrl.u32 %v1373, 7
        %v1375 = vsub.s32 2, %v1374
        %v1376 = vrot.slane %v1010, %v1375
        %v1377 = vlaneseq
        %v1378 = vshrl.u32 %v1377, 7
        %v1379 = vsub.s32 2, %v1378
        %v1380 = vrot.slane %v1011, %v1379
        %v1381 = vlaneseq
        %v1382 = vshrl.u32 %v1381, 7
        %v1383 = vsub.s32 2, %v1382
        %v1384 = vrot.slane %v1012, %v1383
        %v1385 = vlaneseq
        %v1386 = vshrl.u32 %v1385, 7
        %v1387 = vsub.s32 2, %v1386
        %v1388 = vrot.slane %v1013, %v1387
        %v1389 = vmul.f32 %v1313, %v1376
        %v1390 = vmul.f32 %v1311, %v1380
        %v1391 = vmul.f32 %v1309, %v1384
        %v1392 = vmul.f32 %v1315, %v1388
        %v1393 = vmul.f32 %v1314, %v1376
        %v1394 = vmul.f32 %v1312, %v1380
        %v1395 = vmul.f32 %v1310, %v1384
        %v1396 = vmul.f32 %v1316, %v1388
        %v1397 = vadd.f32 %v1365, %v1389
        %v1398 = vadd.f32 %v1366, %v1390
        %v1399 = vadd.f32 %v1367, %v1391
        %v1400 = vadd.f32 %v1368, %v1392
        %v1401 = vadd.f32 %v1369, %v1393
        %v1402 = vadd.f32 %v1370, %v1394
        %v1403 = vadd.f32 %v1371, %v1395
        %v1404 = vadd.f32 %v1372, %v1396
        %v1405 = vlaneseq
        %v1406 = vshrl.u32 %v1405, 7
        %v1407 = vsub.s32 3, %v1406
        %v1408 = vrot.slane %v1010, %v1407
        %v1409 = vlaneseq
        %v1410 = vshrl.u32 %v1409, 7
        %v1411 = vsub.s32 3, %v1410
        %v1412 = vrot.slane %v1011, %v1411
        %v1413 = vlaneseq
        %v1414 = vshrl.u32 %v1413, 7
        %v1415 = vsub.s32 3, %v1414
        %v1416 = vrot.slane %v1012, %v1415
        %v1417 = vlaneseq
        %v1418 = vshrl.u32 %v1417, 7
        %v1419 = vsub.s32 3, %v1418
        %v1420 = vrot.slane %v1013, %v1419
        %v1421 = vmul.f32 %v1290, %v1408
        %v1422 = vmul.f32 %v1288, %v1412
        %v1423 = vmul.f32 %v1286, %v1416
        %v1424 = vmul.f32 %v1284, %v1420
        %v1425 = vmul.f32 %v1291, %v1408
        %v1426 = vmul.f32 %v1289, %v1412
        %v1427 = vmul.f32 %v1287, %v1416
        %v1428 = vmul.f32 %v1285, %v1420
        %v1429 = vlaneseq
        %v1430 = vshrl.u32 %v1429, 7
        %v1431 = vsub.s32 4, %v1430
        %v1432 = vrot.slane %v1010, %v1431
        %v1433 = vlaneseq
        %v1434 = vshrl.u32 %v1433, 7
        %v1435 = vsub.s32 4, %v1434
        %v1436 = vrot.slane %v1011, %v1435
        %v1437 = vlaneseq
        %v1438 = vshrl.u32 %v1437, 7
        %v1439 = vsub.s32 4, %v1438
        %v1440 = vrot.slane %v1012, %v1439
        %v1441 = vlaneseq
        %v1442 = vshrl.u32 %v1441, 7
        %v1443 = vsub.s32 4, %v1442
        %v1444 = vrot.slane %v1013, %v1443
        %v1445 = vmul.f32 %v1259, %v1432
        %v1446 = vmul.f32 %v1260, %v1436
        %v1447 = vmul.f32 %v1261, %v1440
        %v1448 = vmul.f32 %v1262, %v1444
        %v1449 = vmul.f32 %v1263, %v1432
        %v1450 = vmul.f32 %v1264, %v1436
        %v1451 = vmul.f32 %v1265, %v1440
        %v1452 = vmul.f32 %v1266, %v1444
        %v1453 = vadd.f32 %v1421, %v1445
        %v1454 = vadd.f32 %v1422, %v1446
        %v1455 = vadd.f32 %v1423, %v1447
        %v1456 = vadd.f32 %v1424, %v1448
        %v1457 = vadd.f32 %v1425, %v1449
        %v1458 = vadd.f32 %v1426, %v1450
        %v1459 = vadd.f32 %v1427, %v1451
        %v1460 = vadd.f32 %v1428, %v1452
        %v1461 = vlaneseq
        %v1462 = vshrl.u32 %v1461, 7
        %v1463 = vsub.s32 5, %v1462
        %v1464 = vrot.slane %v1010, %v1463
        %v1465 = vlaneseq
        %v1466 = vshrl.u32 %v1465, 7
        %v1467 = vsub.s32 5, %v1466
        %v1468 = vrot.slane %v1011, %v1467
        %v1469 = vlaneseq
        %v1470 = vshrl.u32 %v1469, 7
        %v1471 = vsub.s32 5, %v1470
        %v1472 = vrot.slane %v1012, %v1471
        %v1473 = vlaneseq
        %v1474 = vshrl.u32 %v1473, 7
        %v1475 = vsub.s32 5, %v1474
        %v1476 = vrot.slane %v1013, %v1475
        %v1477 = vmul.f32 %v1313, %v1464
        %v1478 = vmul.f32 %v1311, %v1468
        %v1479 = vmul.f32 %v1309, %v1472
        %v1480 = vmul.f32 %v1315, %v1476
        %v1481 = vmul.f32 %v1314, %v1464
        %v1482 = vmul.f32 %v1312, %v1468
        %v1483 = vmul.f32 %v1310, %v1472
        %v1484 = vmul.f32 %v1316, %v1476
        %v1485 = vadd.f32 %v1453, %v1477
        %v1486 = vadd.f32 %v1454, %v1478
        %v1487 = vadd.f32 %v1455, %v1479
        %v1488 = vadd.f32 %v1456, %v1480
        %v1489 = vadd.f32 %v1457, %v1481
        %v1490 = vadd.f32 %v1458, %v1482
        %v1491 = vadd.f32 %v1459, %v1483
        %v1492 = vadd.f32 %v1460, %v1484
        %v1493 = vlaneseq
        %v1494 = vshrl.u32 %v1493, 7
        %v1495 = vsub.s32 6, %v1494
        %v1496 = vrot.slane %v1010, %v1495
        %v1497 = vlaneseq
        %v1498 = vshrl.u32 %v1497, 7
        %v1499 = vsub.s32 6, %v1498
        %v1500 = vrot.slane %v1011, %v1499
        %v1501 = vlaneseq
        %v1502 = vshrl.u32 %v1501, 7
        %v1503 = vsub.s32 6, %v1502
        %v1504 = vrot.slane %v1012, %v1503
        %v1505 = vlaneseq
        %v1506 = vshrl.u32 %v1505, 7
        %v1507 = vsub.s32 6, %v1506
        %v1508 = vrot.slane %v1013, %v1507
        %v1509 = vmul.f32 %v1290, %v1496
        %v1510 = vmul.f32 %v1288, %v1500
        %v1511 = vmul.f32 %v1286, %v1504
        %v1512 = vmul.f32 %v1284, %v1508
        %v1513 = vmul.f32 %v1291, %v1496
        %v1514 = vmul.f32 %v1289, %v1500
        %v1515 = vmul.f32 %v1287, %v1504
        %v1516 = vmul.f32 %v1285, %v1508
        %v1517 = vlaneseq
        %v1518 = vshrl.u32 %v1517, 7
        %v1519 = vsub.s32 7, %v1518
        %v1520 = vrot.slane %v1010, %v1519
        %v1521 = vlaneseq
        %v1522 = vshrl.u32 %v1521, 7
        %v1523 = vsub.s32 7, %v1522
        %v1524 = vrot.slane %v1011, %v1523
        %v1525 = vlaneseq
        %v1526 = vshrl.u32 %v1525, 7
        %v1527 = vsub.s32 7, %v1526
        %v1528 = vrot.slane %v1012, %v1527
        %v1529 = vlaneseq
        %v1530 = vshrl.u32 %v1529, 7
        %v1531 = vsub.s32 7, %v1530
        %v1532 = vrot.slane %v1013, %v1531
        %v1533 = vmul.f32 %v1259, %v1520
        %v1534 = vmul.f32 %v1260, %v1524
        %v1535 = vmul.f32 %v1261, %v1528
        %v1536 = vmul.f32 %v1262, %v1532
        %v1537 = vmul.f32 %v1263, %v1520
        %v1538 = vmul.f32 %v1264, %v1524
        %v1539 = vmul.f32 %v1265, %v1528
        %v1540 = vmul.f32 %v1266, %v1532
        %v1541 = vadd.f32 %v1509, %v1533
        %v1542 = vadd.f32 %v1510, %v1534
        %v1543 = vadd.f32 %v1511, %v1535
        %v1544 = vadd.f32 %v1512, %v1536
        %v1545 = vadd.f32 %v1513, %v1537
        %v1546 = vadd.f32 %v1514, %v1538
        %v1547 = vadd.f32 %v1515, %v1539
        %v1548 = vadd.f32 %v1516, %v1540
        %v1549 = vlaneseq
        %v1550 = vshrl.u32 %v1549, 7
        %v1551 = vsub.s32 0, %v1550
        %v1552 = vrot.slane %v1014, %v1551
        %v1553 = vlaneseq
        %v1554 = vshrl.u32 %v1553, 7
        %v1555 = vsub.s32 0, %v1554
        %v1556 = vrot.slane %v1015, %v1555
        %v1557 = vlaneseq
        %v1558 = vshrl.u32 %v1557, 7
        %v1559 = vsub.s32 0, %v1558
        %v1560 = vrot.slane %v1016, %v1559
        %v1561 = vlaneseq
        %v1562 = vshrl.u32 %v1561, 7
        %v1563 = vsub.s32 0, %v1562
        %v1564 = vrot.slane %v1017, %v1563
        %v1565 = vmul.f32 %v1313, %v1552
        %v1566 = vmul.f32 %v1311, %v1556
        %v1567 = vmul.f32 %v1309, %v1560
        %v1568 = vmul.f32 %v1315, %v1564
        %v1569 = vmul.f32 %v1314, %v1552
        %v1570 = vmul.f32 %v1312, %v1556
        %v1571 = vmul.f32 %v1310, %v1560
        %v1572 = vmul.f32 %v1316, %v1564
        %v1573 = vadd.f32 %v1541, %v1565
        %v1574 = vadd.f32 %v1542, %v1566
        %v1575 = vadd.f32 %v1543, %v1567
        %v1576 = vadd.f32 %v1544, %v1568
        %v1577 = vadd.f32 %v1545, %v1569
        %v1578 = vadd.f32 %v1546, %v1570
        %v1579 = vadd.f32 %v1547, %v1571
        %v1580 = vadd.f32 %v1548, %v1572
        %v1589 = vrot.slane %v1397, 7
        %v1590 = vrot.slane %v1398, 7
        %v1591 = vrot.slane %v1399, 7
        %v1592 = vrot.slane %v1400, 7
        %v1593 = vrot.slane %v1401, 7
        %v1594 = vsel %vm805, %v1589, %v1593
        %v1595 = vrot.slane %v1402, 7
        %v1596 = vsel %vm805, %v1590, %v1595
        %v1597 = vrot.slane %v1403, 7
        %v1598 = vsel %vm805, %v1591, %v1597
        %v1599 = vrot.slane %v1404, 7
        %v1600 = vsel %vm805, %v1592, %v1599
        %v1609 = vsel %vm805, 0.0, %v1589
        %v1610 = vsel %vm805, 0.0, %v1590
        %v1611 = vsel %vm805, 0.0, %v1591
        %v1612 = vsel %vm805, 0.0, %v1592
        %v1613 = vadd.f32 %v1609, %v1485
        %v1614 = vadd.f32 %v1610, %v1486
        %v1615 = vadd.f32 %v1611, %v1487
        %v1616 = vadd.f32 %v1612, %v1488
        %v1617 = vadd.f32 %v1594, %v1489
        %v1618 = vadd.f32 %v1596, %v1490
        %v1619 = vadd.f32 %v1598, %v1491
        %v1620 = vadd.f32 %v1600, %v1492
        %v1629 = vrot.slane %v1573, 1
        %v1630 = vrot.slane %v1577, 1
        %v1631 = vsel %vm826, %v1629, %v1630
        %v1632 = vrot.slane %v1574, 1
        %v1633 = vrot.slane %v1578, 1
        %v1634 = vsel %vm826, %v1632, %v1633
        %v1635 = vrot.slane %v1575, 1
        %v1636 = vrot.slane %v1579, 1
        %v1637 = vsel %vm826, %v1635, %v1636
        %v1638 = vrot.slane %v1576, 1
        %v1639 = vrot.slane %v1580, 1
        %v1640 = vsel %vm826, %v1638, %v1639
        %v1649 = vsel %vm826, %v1630, 0.0
        %v1650 = vsel %vm826, %v1633, 0.0
        %v1651 = vsel %vm826, %v1636, 0.0
        %v1652 = vsel %vm826, %v1639, 0.0
        %v1653 = vadd.f32 %v1613, %v1631
        %v1654 = vadd.f32 %v1614, %v1634
        %v1655 = vadd.f32 %v1615, %v1637
        %v1656 = vadd.f32 %v1616, %v1640
        %v1657 = vadd.f32 %v1617, %v1649
        %v1658 = vadd.f32 %v1618, %v1650
        %v1659 = vadd.f32 %v1619, %v1651
        %v1660 = vadd.f32 %v1620, %v1652
        %v1662 = vlaneseq
        %v1663 = vshrl.u32 %v1662, 7
        %v1664 = vsub.s32 0, %v1663
        %v1665 = vrot.slane %v1018, %v1664
        %v1666 = vlaneseq
        %v1667 = vshrl.u32 %v1666, 7
        %v1668 = vsub.s32 1, %v1667
        %v1669 = vrot.slane %v1018, %v1668
        %v1670 = vlaneseq
        %v1671 = vshrl.u32 %v1670, 7
        %v1672 = vsub.s32 2, %v1671
        %v1673 = vrot.slane %v1018, %v1672
        %v1674 = vlaneseq
        %v1675 = vshrl.u32 %v1674, 7
        %v1676 = vsub.s32 3, %v1675
        %v1677 = vrot.slane %v1018, %v1676
        %v1682 = vadd.f32 %v1653, %v1665
        %v1683 = vadd.f32 %v1654, %v1669
        %v1684 = vadd.f32 %v1655, %v1673
        %v1685 = vadd.f32 %v1656, %v1677
        %v1686 = vadd.f32 %v1657, %v1665
        %v1687 = vadd.f32 %v1658, %v1669
        %v1688 = vadd.f32 %v1659, %v1673
        %v1689 = vadd.f32 %v1660, %v1677
        %v1690 = vmax.f32 %v1682, 0.0
        %v1691 = vmax.f32 %v1683, 0.0
        %v1692 = vmax.f32 %v1684, 0.0
        %v1693 = vmax.f32 %v1685, 0.0
        %v1694 = vmax.f32 %v1686, 0.0
        %v1695 = vmax.f32 %v1687, 0.0
        %v1696 = vmax.f32 %v1688, 0.0
        %v1697 = vmax.f32 %v1689, 0.0
        %v1699 = vlaneseq
        %v1700 = vshrl.u32 %v1699, 7
        %v1701 = vsub.s32 0, %v1700
        %v1702 = vrot.slane %v1083, %v1701
        %1704 = vmatprep.subr.mxu0 0.0
        %1705 = vmatpush1.msra.mxu0 %v1034
        %1706 = vmatprep.subr.mxu0 0.0
        %1707 = vmatpush1.msra.mxu0 %v1033
        %1708 = vmatprep.subr.mxu0 0.0
        %1709 = vmatpush1.msra.mxu0 %v1032
        %1710 = vmatprep.subr.mxu0 0.0
        %1711 = vmatpush1.msra.mxu0 %v1031
        %1712 = vmatprep.subr.mxu0 0.0
        %1713 = vmatpush1.msra.mxu0 %v1030
        %1714 = vmatprep.subr.mxu0 0.0
        %1715 = vmatpush1.msra.mxu0 %v1029
        %1716 = vmatprep.subr.mxu0 0.0
        %1717 = vmatpush1.msra.mxu0 %v1028
        %1718 = vmatprep.subr.mxu0 0.0
        %1719 = vmatpush1.msra.mxu0 %v1027
        %1720 = vmatprep.subr.mxu0 0.0
        %1721 = vmatpush1.msra.mxu0 %v1026
        %1722 = vmatprep.subr.mxu0 0.0
        %1723 = vmatpush1.msra.mxu0 %v1025
        %1724 = vmatprep.subr.mxu0 0.0
        %1725 = vmatpush1.msra.mxu0 %v1024
        %1726 = vmatprep.subr.mxu0 0.0
        %1727 = vmatpush1.msra.mxu0 %v1023
        %1728 = vmatprep.subr.mxu0 0.0
        %1729 = vmatpush1.msra.mxu0 %v1022
        %1730 = vmatprep.subr.mxu0 0.0
        %1731 = vmatpush1.msra.mxu0 %v1021
        %1732 = vmatprep.subr.mxu0 0.0
        %1733 = vmatpush1.msra.mxu0 %v1020
        %1734 = vmatprep.subr.mxu0 0.0
        %1735 = vmatpush1.msra.mxu0 %v1019
        %1736 = vmatprep.subr.mxu0 0.0
        %1737 = vmatpush2.msra.mxu0 %v1050
        %1738 = vmatprep.subr.mxu0 0.0
        %1739 = vmatpush2.msra.mxu0 %v1049
        %1740 = vmatprep.subr.mxu0 0.0
        %1741 = vmatpush2.msra.mxu0 %v1048
        %1742 = vmatprep.subr.mxu0 0.0
        %1743 = vmatpush2.msra.mxu0 %v1047
        %1744 = vmatprep.subr.mxu0 0.0
        %1745 = vmatpush2.msra.mxu0 %v1046
        %1746 = vmatprep.subr.mxu0 0.0
        %1747 = vmatpush2.msra.mxu0 %v1045
        %1748 = vmatprep.subr.mxu0 0.0
        %1749 = vmatpush2.msra.mxu0 %v1044
        %1750 = vmatprep.subr.mxu0 0.0
        %1751 = vmatpush2.msra.mxu0 %v1043
        %1752 = vmatprep.subr.mxu0 0.0
        %1753 = vmatpush2.msra.mxu0 %v1042
        %1754 = vmatprep.subr.mxu0 0.0
        %1755 = vmatpush2.msra.mxu0 %v1041
        %1756 = vmatprep.subr.mxu0 0.0
        %1757 = vmatpush2.msra.mxu0 %v1040
        %1758 = vmatprep.subr.mxu0 0.0
        %1759 = vmatpush2.msra.mxu0 %v1039
        %1760 = vmatprep.subr.mxu0 0.0
        %1761 = vmatpush2.msra.mxu0 %v1038
        %1762 = vmatprep.subr.mxu0 0.0
        %1763 = vmatpush2.msra.mxu0 %v1037
        %1764 = vmatprep.subr.mxu0 0.0
        %1765 = vmatpush2.msra.mxu0 %v1036
        %1766 = vmatprep.subr.mxu0 0.0
        %1767 = vmatpush2.msra.mxu0 %v1035
        %1768 = vmatprep.mubr.f32.mxu0 %v1691
        %1769 = vmatmul.mubr.f32.gmra.mxu0 %v1690
        %v1770 = vpop.f32.mrf.mxu0
        %v1771 = vadd.f32 %v1702, %v1770
        %v1772 = vpop.f32.mrf.mxu0
        %1773 = vmatprep.mubr.f32.mxu0 %v1695
        %1774 = vmatmul.mubr.f32.gmra.mxu0 %v1694
        %v1775 = vpop.f32.mrf.mxu0
        %v1776 = vadd.f32 %v1702, %v1775
        %v1777 = vpop.f32.mrf.mxu0
        %1778 = vdwg.mxu0
        %1779 = vmatprep.subr.mxu0 0.0
        %1780 = vmatpush1.msra.mxu0 %v1066
        %1781 = vmatprep.subr.mxu0 0.0
        %1782 = vmatpush1.msra.mxu0 %v1065
        %1783 = vmatprep.subr.mxu0 0.0
        %1784 = vmatpush1.msra.mxu0 %v1064
        %1785 = vmatprep.subr.mxu0 0.0
        %1786 = vmatpush1.msra.mxu0 %v1063
        %1787 = vmatprep.subr.mxu0 0.0
        %1788 = vmatpush1.msra.mxu0 %v1062
        %1789 = vmatprep.subr.mxu0 0.0
        %1790 = vmatpush1.msra.mxu0 %v1061
        %1791 = vmatprep.subr.mxu0 0.0
        %1792 = vmatpush1.msra.mxu0 %v1060
        %1793 = vmatprep.subr.mxu0 0.0
        %1794 = vmatpush1.msra.mxu0 %v1059
        %1795 = vmatprep.subr.mxu0 0.0
        %1796 = vmatpush1.msra.mxu0 %v1058
        %1797 = vmatprep.subr.mxu0 0.0
        %1798 = vmatpush1.msra.mxu0 %v1057
        %1799 = vmatprep.subr.mxu0 0.0
        %1800 = vmatpush1.msra.mxu0 %v1056
        %1801 = vmatprep.subr.mxu0 0.0
        %1802 = vmatpush1.msra.mxu0 %v1055
        %1803 = vmatprep.subr.mxu0 0.0
        %1804 = vmatpush1.msra.mxu0 %v1054
        %1805 = vmatprep.subr.mxu0 0.0
        %1806 = vmatpush1.msra.mxu0 %v1053
        %1807 = vmatprep.subr.mxu0 0.0
        %1808 = vmatpush1.msra.mxu0 %v1052
        %1809 = vmatprep.subr.mxu0 0.0
        %1810 = vmatpush1.msra.mxu0 %v1051
        %1811 = vmatprep.subr.mxu0 0.0
        %1812 = vmatpush2.msra.mxu0 %v1082
        %1813 = vmatprep.subr.mxu0 0.0
        %1814 = vmatpush2.msra.mxu0 %v1081
        %1815 = vmatprep.subr.mxu0 0.0
        %1816 = vmatpush2.msra.mxu0 %v1080
        %1817 = vmatprep.subr.mxu0 0.0
        %1818 = vmatpush2.msra.mxu0 %v1079
        %1819 = vmatprep.subr.mxu0 0.0
        %1820 = vmatpush2.msra.mxu0 %v1078
        %1821 = vmatprep.subr.mxu0 0.0
        %1822 = vmatpush2.msra.mxu0 %v1077
        %1823 = vmatprep.subr.mxu0 0.0
        %1824 = vmatpush2.msra.mxu0 %v1076
        %1825 = vmatprep.subr.mxu0 0.0
        %1826 = vmatpush2.msra.mxu0 %v1075
        %1827 = vmatprep.subr.mxu0 0.0
        %1828 = vmatpush2.msra.mxu0 %v1074
        %1829 = vmatprep.subr.mxu0 0.0
        %1830 = vmatpush2.msra.mxu0 %v1073
        %1831 = vmatprep.subr.mxu0 0.0
        %1832 = vmatpush2.msra.mxu0 %v1072
        %1833 = vmatprep.subr.mxu0 0.0
        %1834 = vmatpush2.msra.mxu0 %v1071
        %1835 = vmatprep.subr.mxu0 0.0
        %1836 = vmatpush2.msra.mxu0 %v1070
        %1837 = vmatprep.subr.mxu0 0.0
        %1838 = vmatpush2.msra.mxu0 %v1069
        %1839 = vmatprep.subr.mxu0 0.0
        %1840 = vmatpush2.msra.mxu0 %v1068
        %1841 = vmatprep.subr.mxu0 0.0
        %1842 = vmatpush2.msra.mxu0 %v1067
        %1843 = vmatprep.mubr.f32.mxu0 %v1693
        %1844 = vmatmul.mubr.f32.gmra.mxu0 %v1692
        %v1845 = vpop.f32.mrf.mxu0
        %v1846 = vadd.f32 %v1771, %v1845
        %v1847 = vpop.f32.mrf.mxu0
        %1848 = vmatprep.mubr.f32.mxu0 %v1697
        %1849 = vmatmul.mubr.f32.gmra.mxu0 %v1696
        %v1850 = vpop.f32.mrf.mxu0
        %v1851 = vadd.f32 %v1776, %v1850
        %v1852 = vpop.f32.mrf.mxu0
        %1853 = vdwg.mxu0
        %v1854 = vadd.f32 %v1846, %v943
        %v1855 = vadd.f32 %v1851, %v944
        %v1856 = vmax.f32 %v1854, 0.0
        %v1857 = vmax.f32 %v1855, 0.0
        %1858 = vst [vmem:[%s484] sm:$0xff] %v1856
        %1859 = vst [vmem:[%s484 + $0x8] sm:$0xff] %v1857
        %p1860 = scmp.lt.s32.totalorder %s26, 1
        %s1861 = scalar_select %p1860, %s26, 1
        %s1862 = smul.addr %s1861, 2
        %s1863 = smul.addr %s1862, 8
        %s1864 = scalar_lea.vmem %s13, %s1863
        // Predicated region
        $region85: #{double_conv_mobilenet.1} parent=71 // pred_check
          %p1865 = pneg %p322
        $region86: #{double_conv_mobilenet.1} parent=71 // pred_check_branch
          %1867 = sbr.rel (%p1865) target = $region88
        $region87: #{double_conv_mobilenet.1} parent=71 // pred_region
          _
        $region88: #{double_conv_mobilenet.1} parent=71 // pred_fallthru
          _
      $region72: #{double_conv_mobilenet.1} parent=5 // pred_fallthru
        _
      %p1868 = scmp.le.s32.totalorder 2, %s21
      // Predicated region
      $region89: #{double_conv_mobilenet.1} parent=5 // pred_check
        %p1869 = pneg %p1868
      $region90: #{double_conv_mobilenet.1} parent=5 // pred_check_branch
        %1871 = sbr.rel (%p1869) target = $region92
      $region91: #{double_conv_mobilenet.1} parent=5 // pred_region
        %s1872 = ssub.s32 %s21, 2
        // Predicated region
        $region93: #{double_conv_mobilenet.1} parent=91 // pred_check
          %p1873 = pneg %p328
        $region94: #{double_conv_mobilenet.1} parent=91 // pred_check_branch
          %1875 = sbr.rel (%p1873) target = $region96
        $region95: #{double_conv_mobilenet.1} parent=91 // pred_region
          %p1876 = scmp.lt.s32.totalorder %s27, 1
          %s1877 = scalar_select %p1876, %s27, 1
          %s1878 = smul.addr %s1877, 2
          %s1879 = smul.addr %s1878, 8
          %s1880 = scalar_lea.vmem %s13, %s1879
        $region96: #{double_conv_mobilenet.1} parent=91 // pred_fallthru
          _
      $region92: #{double_conv_mobilenet.1} parent=5 // pred_fallthru
        _
    $region6: #{double_conv_mobilenet.1} parent=1 // loop_footer
      %s25 = sadd.s32 1, %s21
    $region7: #{double_conv_mobilenet.1} parent=1 // loop_footer_branch
      %20 = sbr.rel target = $region3
    $region8: #{double_conv_mobilenet.1} parent=1 // loop_exit
      _
    %1881 = vsyncpa [#allocation3], 1
    %s1882 = scalar_lea.sflag [#allocation3], 1
    %1883 = vsyncpa %s1882, 1
    %1884 = vsyncpa [#allocation5], 1

</llo_original>
